<compile_context>
chip_gen: v6e
topology: v6e:2x2x1
jax: 0.10.0
libtpu: 0.0.40
codegen_flags: <defaults>
</compile_context>

<pallas_src>
import jax
import jax.numpy as jnp
from jax import lax
from jax.experimental import pallas as pl
from jax.experimental.pallas import tpu as pltpu

WIN = 7          # window size (ssim buffer w = ones(1,1,7,7)/49)
K1 = 0.01
K2 = 0.03

_OUT_TILE = (8, 128)   # lane-dense per-step output tile (scalar broadcast into it)


def _vmem_capacity_bytes():
    """Physical VMEM per TensorCore; conservative 64 MiB (v7x) fallback."""
    try:
        info = pltpu.get_tpu_info()
        cap = int(getattr(info, "vmem_capacity_bytes", 0) or 0)
        if cap > 0:
            return cap
    except Exception:
        pass
    return 64 << 20


def _step_bytes(cb, H, W, win, in_itemsize):
    """Peak VMEM estimate for one grid step with `cb` packed channels.

    Every working term scales with cb (the channels are processed as one
    stacked matrix, so their live ranges genuinely overlap)."""
    Ho, Wo = H - win + 1, W - win + 1
    hw = H * W
    io = 2 * 2 * cb * hw * in_itemsize          # x, y input blocks, double-buffered
    f32_imgs = 2 * cb * hw * 4                  # xs, ys as f32
    stack = 5 * cb * hw * 4                     # stacked [x, y, xx, yy, xy]
    stack_split = 5 * cb * hw * 2 * 2           # bf16 hi/lo copies of the stack
    t = 5 * cb * H * Wo * 4                     # width-pass box sums (f32)
    t_split = 5 * cb * H * Wo * 2 * 2           # bf16 hi/lo copies of t
    u = 5 * cb * Ho * Wo * 4                    # five box means per channel
    combine = 8 * cb * Ho * Wo * 4              # SSIM combine temporaries
    mats = (Ho * H + W * Wo) * 2                # in-kernel bf16 band matrices
    out = 2 * _OUT_TILE[0] * _OUT_TILE[1] * 4
    return io + f32_imgs + stack + stack_split + t + t_split + u + combine + mats + out


def _pick_channel_block_and_vmem(B, C, H, W, win, in_itemsize):
    """Channels packed per grid step + vmem_limit, sized per TPU generation."""
    cap = _vmem_capacity_bytes()
    budget = (cap * 3) // 4            # ~48 MiB on v7x (64 MiB), ~96 MiB on v5e/v6e (128 MiB)

    divisors = [d for d in range(min(C, 8), 0, -1) if C % d == 0]
    feasible = [d for d in divisors if _step_bytes(d, H, W, win, in_itemsize) <= budget]
    if not feasible:
        # TODO(synk): spatial (win-1)-row/col halo tiling (Wo in multiples of 128)
        # for very large images; required before 512^2+ f32 inputs fit v7x VMEM.
        feasible = [1]

    cb = feasible[0]                   # largest feasible = biggest stacked matmul
    if cap <= (64 << 20):
        # Small-VMEM parts are the megacore (2-TC) generation: keep >= 4 parallel
        # grid steps so both TensorCores stay busy (opt #10).
        for d in feasible:
            if B * (C // d) >= 4:
                cb = d
                break

    step = _step_bytes(cb, H, W, win, in_itemsize)
    # Never request the full physical VMEM: leave headroom for Mosaic's internal
    # scratch and the double-buffered input windows (opt #3).
    vmem_limit = int(min((cap * 7) // 8, max(32 << 20, step * 3 // 2)))
    return cb, vmem_limit


def _make_ssim_kernel(CB, H, W, win, k1, k2):
    Ho = H - win + 1
    Wo = W - win + 1
    NP = win * win
    inv_np = 1.0 / NP
    cov_norm = NP / (NP - 1)
    NB = 5 * CB                        # stacked (H, W) slices per grid step

    def split2(a):
        """Two-term bf16 split: a ~= hi + lo with ~2^-17 relative accuracy.

        The other matmul operand is an exact 0/1 bf16 band matrix, so two
        single-pass bf16 MXU matmuls accumulated in f32 replace a 6-pass
        f32 HIGHEST matmul at negligible accuracy cost."""
        hi = a.astype(jnp.bfloat16)
        lo = (a - hi.astype(jnp.float32)).astype(jnp.bfloat16)
        return hi, lo

    def kernel(x_ref, y_ref, out_ref):
        # ---- 0/1 band matrices generated in-kernel (bf16 exact; opt #7) ----
        w_i = lax.broadcasted_iota(jnp.int32, (W, Wo), 0)
        wo_i = lax.broadcasted_iota(jnp.int32, (W, Wo), 1)
        rw = jnp.where((w_i >= wo_i) & (w_i < wo_i + win), 1.0, 0.0).astype(jnp.bfloat16)
        ho_i = lax.broadcasted_iota(jnp.int32, (Ho, H), 0)
        h_i = lax.broadcasted_iota(jnp.int32, (Ho, H), 1)
        rh = jnp.where((h_i >= ho_i) & (h_i < ho_i + win), 1.0, 0.0).astype(jnp.bfloat16)

        xs = x_ref[0].astype(jnp.float32)          # (CB, H, W)
        ys = y_ref[0].astype(jnp.float32)          # (CB, H, W)
        x2 = xs.reshape(CB * H, W)
        y2 = ys.reshape(CB * H, W)

        # ---- stage 1: ONE stacked matmul for the width-direction box sum ----
        # M = 5*CB*H keeps the MXU streaming hundreds of rows per push.
        stack = jnp.concatenate([x2, y2, x2 * x2, y2 * y2, x2 * y2], axis=0)  # (NB*H, W)
        s_hi, s_lo = split2(stack)
        t = (jnp.dot(s_hi, rw, preferred_element_type=jnp.float32)
             + jnp.dot(s_lo, rw, preferred_element_type=jnp.float32))         # (NB*H, Wo)

        # ---- stage 2: NB back-to-back matmuls for the height direction ------
        # (block-diagonal Rh would make this a single matmul but wastes 5*CB x
        #  the flops and grows quadratically with 5*CB*H, so per-block issues
        #  with nothing interleaved are used instead.)
        t_hi, t_lo = split2(t)
        u = []
        for b in range(NB):            # block order: filter-major, channel-minor
            th = t_hi[b * H:(b + 1) * H, :]
            tl = t_lo[b * H:(b + 1) * H, :]
            ub = (jnp.dot(rh, th, preferred_element_type=jnp.float32)
                  + jnp.dot(rh, tl, preferred_element_type=jnp.float32))      # (Ho, Wo)
            u.append(ub * inv_np)

        # ---- SSIM combine + reduction ---------------------------------------
        # The 4*CB min/max reductions stay as-is: they ride the XLU while the
        # MXU/VPU are busy (only worth batching if a bundle dump shows the XLU
        # as the binding slot).
        row_acc = jnp.zeros((1, Wo), jnp.float32)
        for c in range(CB):
            xc = xs[c]
            yc = ys[c]
            cur_range = jnp.maximum(jnp.max(yc) - jnp.min(yc),
                                    jnp.max(xc) - jnp.min(xc))
            C1 = (k1 * cur_range) ** 2
            C2 = (k2 * cur_range) ** 2

            ux, uy = u[c], u[CB + c]
            uxx, uyy, uxy = u[2 * CB + c], u[3 * CB + c], u[4 * CB + c]

            vx = cov_norm * (uxx - ux * ux)
            vy = cov_norm * (uyy - uy * uy)
            vxy = cov_norm * (uxy - ux * uy)

            A1 = 2.0 * ux * uy + C1
            A2 = 2.0 * vxy + C2
            B1 = ux * ux + uy * uy + C1
            B2 = vx + vy + C2

            # NOTE: cur_range == 0 (constant slice) -> B1*B2 == 0 -> NaN,
            # matching the PyTorch reference behaviour.
            s = (A1 * A2) * pl.reciprocal(B1 * B2, approx=True)               # (Ho, Wo)

            # sublane-direction reduce per channel; the single lane (XLU)
            # reduce per grid step happens once, below.
            row_acc = row_acc + jnp.sum(s, axis=0, keepdims=True)             # (1, Wo)

        total = jnp.sum(row_acc)
        out_ref[...] = jnp.full((1, 1) + _OUT_TILE, total, jnp.float32)

    return kernel


def ssim_loss_pallas(X, Y, win=WIN, k1=K1, k2=K2):
    """Returns 1 - mean(SSIM map over all batches/channels), matching the PyTorch module."""
    B, C, H, W = X.shape
    Ho, Wo = H - win + 1, W - win + 1

    CB, vmem_limit = _pick_channel_block_and_vmem(
        B, C, H, W, win, jnp.dtype(X.dtype).itemsize)
    G = C // CB

    kernel = _make_ssim_kernel(CB, H, W, win, k1, k2)

    partial = pl.pallas_call(
        kernel,
        out_shape=jax.ShapeDtypeStruct((B, G) + _OUT_TILE, jnp.float32),
        grid=(B, G),
        in_specs=[
            pl.BlockSpec((1, CB, H, W), lambda b, g: (b, g, 0, 0)),
            pl.BlockSpec((1, CB, H, W), lambda b, g: (b, g, 0, 0)),
        ],
        out_specs=pl.BlockSpec((1, 1) + _OUT_TILE, lambda b, g: (b, g, 0, 0)),
        compiler_params=pltpu.CompilerParams(
            dimension_semantics=("parallel", "parallel"),
            vmem_limit_bytes=vmem_limit,
        ),
    )(X, Y)

    ssim_sum = jnp.sum(partial[:, :, 0, 0])
    n_elems = B * C * Ho * Wo
    return 1.0 - ssim_sum / n_elems


def ssim_loss_ref(X, Y, win=WIN, k1=K1, k2=K2):
    """Pure-JAX reference mirroring the PyTorch forward (shift-add box filter)."""
    B, C, H, W = X.shape
    NP = win * win
    cov_norm = NP / (NP - 1)
    Ho, Wo = H - win + 1, W - win + 1

    def box(a):  # a: (B, H, W) -> (B, Ho, Wo), mean over win x win window
        out = jnp.zeros((a.shape[0], Ho, Wo), a.dtype)
        for di in range(win):
            for dj in range(win):
                out = out + a[:, di:di + Ho, dj:dj + Wo]
        return out / NP

    maps = []
    for c in range(C):
        x = X[:, c].astype(jnp.float32)
        y = Y[:, c].astype(jnp.float32)
        rng = jnp.maximum(y.max((1, 2)) - y.min((1, 2)), x.max((1, 2)) - x.min((1, 2)))
        C1 = ((k1 * rng) ** 2)[:, None, None]
        C2 = ((k2 * rng) ** 2)[:, None, None]
        ux, uy = box(x), box(y)
        uxx, uyy, uxy = box(x * x), box(y * y), box(x * y)
        vx = cov_norm * (uxx - ux * ux)
        vy = cov_norm * (uyy - uy * uy)
        vxy = cov_norm * (uxy - ux * uy)
        A1, A2 = 2 * ux * uy + C1, 2 * vxy + C2
        B1, B2 = ux * ux + uy * uy + C1, vx + vy + C2
        maps.append(A1 * A2 / (B1 * B2))
    S = jnp.stack(maps)
    return 1.0 - S.mean()


if __name__ == "__main__":
    key = jax.random.PRNGKey(0)
    kx, ky = jax.random.split(key)
    B, C, H, W = 2, 4, 16, 16
    X = jax.random.uniform(kx, (B, C, H, W), dtype=jnp.float32)
    Y = jax.random.uniform(ky, (B, C, H, W), dtype=jnp.float32)

    loss = jax.jit(ssim_loss_pallas)(X, Y)
    loss = jax.block_until_ready(loss)

    ref = ssim_loss_ref(X, Y)
    assert jnp.allclose(loss, ref, rtol=1e-3, atol=1e-5), (loss, ref)

    print("KERNEL_OK")
</pallas_src>

<mosaic_0001>
module attributes {stable_mosaic.version = 11 : i64} {
  func.func @kernel(%arg0: i32, %arg1: i32, %arg2: memref<1x2x16x16xf32, #tpu.memory_space<vmem>>, %arg3: memref<1x2x16x16xf32, #tpu.memory_space<vmem>>, %arg4: memref<1x1x8x128xf32, #tpu.memory_space<vmem>>) attributes {dimension_semantics = [#tpu.dimension_semantics<parallel>, #tpu.dimension_semantics<parallel>], iteration_bounds = array<i64: 2, 2>, scalar_prefetch = 0 : i64, scratch_operands = 0 : i64, tpu.core_type = #tpu.core_type<tc>, window_params = [{transform_indices = @transform_0, window_bounds = array<i64: 1, 2, 16, 16>}, {transform_indices = @transform_1, window_bounds = array<i64: 1, 2, 16, 16>}, {transform_indices = @transform_2, window_bounds = array<i64: 1, 1, 8, 128>}]} {
    %0 = tpu.iota {dimensions = array<i32: 0>} : vector<16x10xi32>
    %1 = tpu.iota {dimensions = array<i32: 1>} : vector<16x10xi32>
    %2 = arith.cmpi sge, %0, %1 : vector<16x10xi32>
    %c7_i32 = arith.constant 7 : i32
    %3 = vector.broadcast %c7_i32 : i32 to vector<16x10xi32>
    %4 = arith.addi %1, %3 : vector<16x10xi32>
    %5 = arith.cmpi slt, %0, %4 : vector<16x10xi32>
    %6 = arith.andi %2, %5 : vector<16x10xi1>
    %cst = arith.constant 1.000000e+00 : f32
    %cst_0 = arith.constant 0.000000e+00 : f32
    %7 = vector.broadcast %cst : f32 to vector<16x10xf32>
    %8 = vector.broadcast %cst_0 : f32 to vector<16x10xf32>
    %9 = arith.select %6, %7, %8 : vector<16x10xi1>, vector<16x10xf32>
    %10 = arith.truncf %9 : vector<16x10xf32> to vector<16x10xbf16>
    %11 = tpu.iota {dimensions = array<i32: 0>} : vector<10x16xi32>
    %12 = tpu.iota {dimensions = array<i32: 1>} : vector<10x16xi32>
    %13 = arith.cmpi sge, %12, %11 : vector<10x16xi32>
    %c7_i32_1 = arith.constant 7 : i32
    %14 = vector.broadcast %c7_i32_1 : i32 to vector<10x16xi32>
    %15 = arith.addi %11, %14 : vector<10x16xi32>
    %16 = arith.cmpi slt, %12, %15 : vector<10x16xi32>
    %17 = arith.andi %13, %16 : vector<10x16xi1>
    %cst_2 = arith.constant 1.000000e+00 : f32
    %cst_3 = arith.constant 0.000000e+00 : f32
    %18 = vector.broadcast %cst_2 : f32 to vector<10x16xf32>
    %19 = vector.broadcast %cst_3 : f32 to vector<10x16xf32>
    %20 = arith.select %17, %18, %19 : vector<10x16xi1>, vector<10x16xf32>
    %21 = arith.truncf %20 : vector<10x16xf32> to vector<10x16xbf16>
    %c0 = arith.constant 0 : index
    %c0_4 = arith.constant 0 : index
    %c0_5 = arith.constant 0 : index
    %c0_6 = arith.constant 0 : index
    %22 = vector.load %arg2[%c0, %c0_4, %c0_5, %c0_6] : memref<1x2x16x16xf32, #tpu.memory_space<vmem>>, vector<1x2x16x16xf32>
    %23 = vector.shape_cast %22 : vector<1x2x16x16xf32> to vector<2x16x16xf32>
    %c0_7 = arith.constant 0 : index
    %c0_8 = arith.constant 0 : index
    %c0_9 = arith.constant 0 : index
    %c0_10 = arith.constant 0 : index
    %24 = vector.load %arg3[%c0_7, %c0_8, %c0_9, %c0_10] : memref<1x2x16x16xf32, #tpu.memory_space<vmem>>, vector<1x2x16x16xf32>
    %25 = vector.shape_cast %24 : vector<1x2x16x16xf32> to vector<2x16x16xf32>
    %26 = vector.shape_cast %23 : vector<2x16x16xf32> to vector<32x16xf32>
    %27 = vector.shape_cast %25 : vector<2x16x16xf32> to vector<32x16xf32>
    %28 = arith.mulf %26, %26 : vector<32x16xf32>
    %29 = arith.mulf %27, %27 : vector<32x16xf32>
    %30 = arith.mulf %26, %27 : vector<32x16xf32>
    %31 = tpu.concatenate %26, %27, %28, %29, %30 in 0 : vector<32x16xf32>, vector<32x16xf32>, vector<32x16xf32>, vector<32x16xf32>, vector<32x16xf32> -> vector<160x16xf32>
    %32 = arith.truncf %31 : vector<160x16xf32> to vector<160x16xbf16>
    %33 = arith.extf %32 : vector<160x16xbf16> to vector<160x16xf32>
    %34 = arith.subf %31, %33 : vector<160x16xf32>
    %35 = arith.truncf %34 : vector<160x16xf32> to vector<160x16xbf16>
    %cst_11 = arith.constant dense<0.000000e+00> : vector<160x10xf32>
    %36 = tpu.matmul %32, %10, %cst_11 {dimension_numbers = #tpu.dot_dimension_numbers<[1], [0], [0], [1], [0, 0, 1, 1], [], []>} : vector<160x16xbf16>, vector<16x10xbf16>, vector<160x10xf32> -> vector<160x10xf32>
    %cst_12 = arith.constant dense<0.000000e+00> : vector<160x10xf32>
    %37 = tpu.matmul %35, %10, %cst_12 {dimension_numbers = #tpu.dot_dimension_numbers<[1], [0], [0], [1], [0, 0, 1, 1], [], []>} : vector<160x16xbf16>, vector<16x10xbf16>, vector<160x10xf32> -> vector<160x10xf32>
    %38 = arith.addf %36, %37 : vector<160x10xf32>
    %39 = arith.truncf %38 : vector<160x10xf32> to vector<160x10xbf16>
    %40 = arith.extf %39 : vector<160x10xbf16> to vector<160x10xf32>
    %41 = arith.subf %38, %40 : vector<160x10xf32>
    %42 = arith.truncf %41 : vector<160x10xf32> to vector<160x10xbf16>
    %43 = vector.extract_strided_slice %39 {offsets = [0, 0], sizes = [16, 10], strides = [1, 1]} : vector<160x10xbf16> to vector<16x10xbf16>
    %44 = vector.extract_strided_slice %42 {offsets = [0, 0], sizes = [16, 10], strides = [1, 1]} : vector<160x10xbf16> to vector<16x10xbf16>
    %cst_13 = arith.constant dense<0.000000e+00> : vector<10x10xf32>
    %45 = tpu.matmul %21, %43, %cst_13 {dimension_numbers = #tpu.dot_dimension_numbers<[1], [0], [0], [1], [0, 0, 1, 1], [], []>} : vector<10x16xbf16>, vector<16x10xbf16>, vector<10x10xf32> -> vector<10x10xf32>
    %cst_14 = arith.constant dense<0.000000e+00> : vector<10x10xf32>
    %46 = tpu.matmul %21, %44, %cst_14 {dimension_numbers = #tpu.dot_dimension_numbers<[1], [0], [0], [1], [0, 0, 1, 1], [], []>} : vector<10x16xbf16>, vector<16x10xbf16>, vector<10x10xf32> -> vector<10x10xf32>
    %47 = arith.addf %45, %46 : vector<10x10xf32>
    %cst_15 = arith.constant 0.0204081628 : f32
    %48 = vector.broadcast %cst_15 : f32 to vector<10x10xf32>
    %49 = arith.mulf %47, %48 : vector<10x10xf32>
    %50 = vector.extract_strided_slice %39 {offsets = [16, 0], sizes = [16, 10], strides = [1, 1]} : vector<160x10xbf16> to vector<16x10xbf16>
    %51 = vector.extract_strided_slice %42 {offsets = [16, 0], sizes = [16, 10], strides = [1, 1]} : vector<160x10xbf16> to vector<16x10xbf16>
    %cst_16 = arith.constant dense<0.000000e+00> : vector<10x10xf32>
    %52 = tpu.matmul %21, %50, %cst_16 {dimension_numbers = #tpu.dot_dimension_numbers<[1], [0], [0], [1], [0, 0, 1, 1], [], []>} : vector<10x16xbf16>, vector<16x10xbf16>, vector<10x10xf32> -> vector<10x10xf32>
    %cst_17 = arith.constant dense<0.000000e+00> : vector<10x10xf32>
    %53 = tpu.matmul %21, %51, %cst_17 {dimension_numbers = #tpu.dot_dimension_numbers<[1], [0], [0], [1], [0, 0, 1, 1], [], []>} : vector<10x16xbf16>, vector<16x10xbf16>, vector<10x10xf32> -> vector<10x10xf32>
    %54 = arith.addf %52, %53 : vector<10x10xf32>
    %cst_18 = arith.constant 0.0204081628 : f32
    %55 = vector.broadcast %cst_18 : f32 to vector<10x10xf32>
    %56 = arith.mulf %54, %55 : vector<10x10xf32>
    %57 = vector.extract_strided_slice %39 {offsets = [32, 0], sizes = [16, 10], strides = [1, 1]} : vector<160x10xbf16> to vector<16x10xbf16>
    %58 = vector.extract_strided_slice %42 {offsets = [32, 0], sizes = [16, 10], strides = [1, 1]} : vector<160x10xbf16> to vector<16x10xbf16>
    %cst_19 = arith.constant dense<0.000000e+00> : vector<10x10xf32>
    %59 = tpu.matmul %21, %57, %cst_19 {dimension_numbers = #tpu.dot_dimension_numbers<[1], [0], [0], [1], [0, 0, 1, 1], [], []>} : vector<10x16xbf16>, vector<16x10xbf16>, vector<10x10xf32> -> vector<10x10xf32>
    %cst_20 = arith.constant dense<0.000000e+00> : vector<10x10xf32>
    %60 = tpu.matmul %21, %58, %cst_20 {dimension_numbers = #tpu.dot_dimension_numbers<[1], [0], [0], [1], [0, 0, 1, 1], [], []>} : vector<10x16xbf16>, vector<16x10xbf16>, vector<10x10xf32> -> vector<10x10xf32>
    %61 = arith.addf %59, %60 : vector<10x10xf32>
    %cst_21 = arith.constant 0.0204081628 : f32
    %62 = vector.broadcast %cst_21 : f32 to vector<10x10xf32>
    %63 = arith.mulf %61, %62 : vector<10x10xf32>
    %64 = vector.extract_strided_slice %39 {offsets = [48, 0], sizes = [16, 10], strides = [1, 1]} : vector<160x10xbf16> to vector<16x10xbf16>
    %65 = vector.extract_strided_slice %42 {offsets = [48, 0], sizes = [16, 10], strides = [1, 1]} : vector<160x10xbf16> to vector<16x10xbf16>
    %cst_22 = arith.constant dense<0.000000e+00> : vector<10x10xf32>
    %66 = tpu.matmul %21, %64, %cst_22 {dimension_numbers = #tpu.dot_dimension_numbers<[1], [0], [0], [1], [0, 0, 1, 1], [], []>} : vector<10x16xbf16>, vector<16x10xbf16>, vector<10x10xf32> -> vector<10x10xf32>
    %cst_23 = arith.constant dense<0.000000e+00> : vector<10x10xf32>
    %67 = tpu.matmul %21, %65, %cst_23 {dimension_numbers = #tpu.dot_dimension_numbers<[1], [0], [0], [1], [0, 0, 1, 1], [], []>} : vector<10x16xbf16>, vector<16x10xbf16>, vector<10x10xf32> -> vector<10x10xf32>
    %68 = arith.addf %66, %67 : vector<10x10xf32>
    %cst_24 = arith.constant 0.0204081628 : f32
    %69 = vector.broadcast %cst_24 : f32 to vector<10x10xf32>
    %70 = arith.mulf %68, %69 : vector<10x10xf32>
    %71 = vector.extract_strided_slice %39 {offsets = [64, 0], sizes = [16, 10], strides = [1, 1]} : vector<160x10xbf16> to vector<16x10xbf16>
    %72 = vector.extract_strided_slice %42 {offsets = [64, 0], sizes = [16, 10], strides = [1, 1]} : vector<160x10xbf16> to vector<16x10xbf16>
    %cst_25 = arith.constant dense<0.000000e+00> : vector<10x10xf32>
    %73 = tpu.matmul %21, %71, %cst_25 {dimension_numbers = #tpu.dot_dimension_numbers<[1], [0], [0], [1], [0, 0, 1, 1], [], []>} : vector<10x16xbf16>, vector<16x10xbf16>, vector<10x10xf32> -> vector<10x10xf32>
    %cst_26 = arith.constant dense<0.000000e+00> : vector<10x10xf32>
    %74 = tpu.matmul %21, %72, %cst_26 {dimension_numbers = #tpu.dot_dimension_numbers<[1], [0], [0], [1], [0, 0, 1, 1], [], []>} : vector<10x16xbf16>, vector<16x10xbf16>, vector<10x10xf32> -> vector<10x10xf32>
    %75 = arith.addf %73, %74 : vector<10x10xf32>
    %cst_27 = arith.constant 0.0204081628 : f32
    %76 = vector.broadcast %cst_27 : f32 to vector<10x10xf32>
    %77 = arith.mulf %75, %76 : vector<10x10xf32>
    %78 = vector.extract_strided_slice %39 {offsets = [80, 0], sizes = [16, 10], strides = [1, 1]} : vector<160x10xbf16> to vector<16x10xbf16>
    %79 = vector.extract_strided_slice %42 {offsets = [80, 0], sizes = [16, 10], strides = [1, 1]} : vector<160x10xbf16> to vector<16x10xbf16>
    %cst_28 = arith.constant dense<0.000000e+00> : vector<10x10xf32>
    %80 = tpu.matmul %21, %78, %cst_28 {dimension_numbers = #tpu.dot_dimension_numbers<[1], [0], [0], [1], [0, 0, 1, 1], [], []>} : vector<10x16xbf16>, vector<16x10xbf16>, vector<10x10xf32> -> vector<10x10xf32>
    %cst_29 = arith.constant dense<0.000000e+00> : vector<10x10xf32>
    %81 = tpu.matmul %21, %79, %cst_29 {dimension_numbers = #tpu.dot_dimension_numbers<[1], [0], [0], [1], [0, 0, 1, 1], [], []>} : vector<10x16xbf16>, vector<16x10xbf16>, vector<10x10xf32> -> vector<10x10xf32>
    %82 = arith.addf %80, %81 : vector<10x10xf32>
    %cst_30 = arith.constant 0.0204081628 : f32
    %83 = vector.broadcast %cst_30 : f32 to vector<10x10xf32>
    %84 = arith.mulf %82, %83 : vector<10x10xf32>
    %85 = vector.extract_strided_slice %39 {offsets = [96, 0], sizes = [16, 10], strides = [1, 1]} : vector<160x10xbf16> to vector<16x10xbf16>
    %86 = vector.extract_strided_slice %42 {offsets = [96, 0], sizes = [16, 10], strides = [1, 1]} : vector<160x10xbf16> to vector<16x10xbf16>
    %cst_31 = arith.constant dense<0.000000e+00> : vector<10x10xf32>
    %87 = tpu.matmul %21, %85, %cst_31 {dimension_numbers = #tpu.dot_dimension_numbers<[1], [0], [0], [1], [0, 0, 1, 1], [], []>} : vector<10x16xbf16>, vector<16x10xbf16>, vector<10x10xf32> -> vector<10x10xf32>
    %cst_32 = arith.constant dense<0.000000e+00> : vector<10x10xf32>
    %88 = tpu.matmul %21, %86, %cst_32 {dimension_numbers = #tpu.dot_dimension_numbers<[1], [0], [0], [1], [0, 0, 1, 1], [], []>} : vector<10x16xbf16>, vector<16x10xbf16>, vector<10x10xf32> -> vector<10x10xf32>
    %89 = arith.addf %87, %88 : vector<10x10xf32>
    %cst_33 = arith.constant 0.0204081628 : f32
    %90 = vector.broadcast %cst_33 : f32 to vector<10x10xf32>
    %91 = arith.mulf %89, %90 : vector<10x10xf32>
    %92 = vector.extract_strided_slice %39 {offsets = [112, 0], sizes = [16, 10], strides = [1, 1]} : vector<160x10xbf16> to vector<16x10xbf16>
    %93 = vector.extract_strided_slice %42 {offsets = [112, 0], sizes = [16, 10], strides = [1, 1]} : vector<160x10xbf16> to vector<16x10xbf16>
    %cst_34 = arith.constant dense<0.000000e+00> : vector<10x10xf32>
    %94 = tpu.matmul %21, %92, %cst_34 {dimension_numbers = #tpu.dot_dimension_numbers<[1], [0], [0], [1], [0, 0, 1, 1], [], []>} : vector<10x16xbf16>, vector<16x10xbf16>, vector<10x10xf32> -> vector<10x10xf32>
    %cst_35 = arith.constant dense<0.000000e+00> : vector<10x10xf32>
    %95 = tpu.matmul %21, %93, %cst_35 {dimension_numbers = #tpu.dot_dimension_numbers<[1], [0], [0], [1], [0, 0, 1, 1], [], []>} : vector<10x16xbf16>, vector<16x10xbf16>, vector<10x10xf32> -> vector<10x10xf32>
    %96 = arith.addf %94, %95 : vector<10x10xf32>
    %cst_36 = arith.constant 0.0204081628 : f32
    %97 = vector.broadcast %cst_36 : f32 to vector<10x10xf32>
    %98 = arith.mulf %96, %97 : vector<10x10xf32>
    %99 = vector.extract_strided_slice %39 {offsets = [128, 0], sizes = [16, 10], strides = [1, 1]} : vector<160x10xbf16> to vector<16x10xbf16>
    %100 = vector.extract_strided_slice %42 {offsets = [128, 0], sizes = [16, 10], strides = [1, 1]} : vector<160x10xbf16> to vector<16x10xbf16>
    %cst_37 = arith.constant dense<0.000000e+00> : vector<10x10xf32>
    %101 = tpu.matmul %21, %99, %cst_37 {dimension_numbers = #tpu.dot_dimension_numbers<[1], [0], [0], [1], [0, 0, 1, 1], [], []>} : vector<10x16xbf16>, vector<16x10xbf16>, vector<10x10xf32> -> vector<10x10xf32>
    %cst_38 = arith.constant dense<0.000000e+00> : vector<10x10xf32>
    %102 = tpu.matmul %21, %100, %cst_38 {dimension_numbers = #tpu.dot_dimension_numbers<[1], [0], [0], [1], [0, 0, 1, 1], [], []>} : vector<10x16xbf16>, vector<16x10xbf16>, vector<10x10xf32> -> vector<10x10xf32>
    %103 = arith.addf %101, %102 : vector<10x10xf32>
    %cst_39 = arith.constant 0.0204081628 : f32
    %104 = vector.broadcast %cst_39 : f32 to vector<10x10xf32>
    %105 = arith.mulf %103, %104 : vector<10x10xf32>
    %106 = vector.extract_strided_slice %39 {offsets = [144, 0], sizes = [16, 10], strides = [1, 1]} : vector<160x10xbf16> to vector<16x10xbf16>
    %107 = vector.extract_strided_slice %42 {offsets = [144, 0], sizes = [16, 10], strides = [1, 1]} : vector<160x10xbf16> to vector<16x10xbf16>
    %cst_40 = arith.constant dense<0.000000e+00> : vector<10x10xf32>
    %108 = tpu.matmul %21, %106, %cst_40 {dimension_numbers = #tpu.dot_dimension_numbers<[1], [0], [0], [1], [0, 0, 1, 1], [], []>} : vector<10x16xbf16>, vector<16x10xbf16>, vector<10x10xf32> -> vector<10x10xf32>
    %cst_41 = arith.constant dense<0.000000e+00> : vector<10x10xf32>
    %109 = tpu.matmul %21, %107, %cst_41 {dimension_numbers = #tpu.dot_dimension_numbers<[1], [0], [0], [1], [0, 0, 1, 1], [], []>} : vector<10x16xbf16>, vector<16x10xbf16>, vector<10x10xf32> -> vector<10x10xf32>
    %110 = arith.addf %108, %109 : vector<10x10xf32>
    %cst_42 = arith.constant 0.0204081628 : f32
    %111 = vector.broadcast %cst_42 : f32 to vector<10x10xf32>
    %112 = arith.mulf %110, %111 : vector<10x10xf32>
    %cst_43 = arith.constant 0.000000e+00 : f32
    %113 = vector.broadcast %cst_43 : f32 to vector<1x10xf32>
    %114 = vector.extract_strided_slice %23 {offsets = [0, 0, 0], sizes = [1, 16, 16], strides = [1, 1, 1]} : vector<2x16x16xf32> to vector<1x16x16xf32>
    %115 = vector.shape_cast %114 : vector<1x16x16xf32> to vector<16x16xf32>
    %116 = vector.extract_strided_slice %25 {offsets = [0, 0, 0], sizes = [1, 16, 16], strides = [1, 1, 1]} : vector<2x16x16xf32> to vector<1x16x16xf32>
    %117 = vector.shape_cast %116 : vector<1x16x16xf32> to vector<16x16xf32>
    %118 = vector.shape_cast %117 : vector<16x16xf32> to vector<1x16x16xf32>
    %cst_44 = arith.constant dense<0xFF800000> : vector<1xf32>
    %119 = vector.multi_reduction <maximumf>, %118, %cst_44 [1, 2] : vector<1x16x16xf32> to vector<1xf32>
    %120 = vector.shape_cast %119 : vector<1xf32> to vector<1x1x1xf32>
    %121 = vector.extract %120[0, 0, 0] : f32 from vector<1x1x1xf32>
    %122 = vector.shape_cast %117 : vector<16x16xf32> to vector<1x16x16xf32>
    %cst_45 = arith.constant dense<0x7F800000> : vector<1xf32>
    %123 = vector.multi_reduction <minimumf>, %122, %cst_45 [1, 2] : vector<1x16x16xf32> to vector<1xf32>
    %124 = vector.shape_cast %123 : vector<1xf32> to vector<1x1x1xf32>
    %125 = vector.extract %124[0, 0, 0] : f32 from vector<1x1x1xf32>
    %126 = arith.subf %121, %125 : f32
    %127 = vector.shape_cast %115 : vector<16x16xf32> to vector<1x16x16xf32>
    %cst_46 = arith.constant dense<0xFF800000> : vector<1xf32>
    %128 = vector.multi_reduction <maximumf>, %127, %cst_46 [1, 2] : vector<1x16x16xf32> to vector<1xf32>
    %129 = vector.shape_cast %128 : vector<1xf32> to vector<1x1x1xf32>
    %130 = vector.extract %129[0, 0, 0] : f32 from vector<1x1x1xf32>
    %131 = vector.shape_cast %115 : vector<16x16xf32> to vector<1x16x16xf32>
    %cst_47 = arith.constant dense<0x7F800000> : vector<1xf32>
    %132 = vector.multi_reduction <minimumf>, %131, %cst_47 [1, 2] : vector<1x16x16xf32> to vector<1xf32>
    %133 = vector.shape_cast %132 : vector<1xf32> to vector<1x1x1xf32>
    %134 = vector.extract %133[0, 0, 0] : f32 from vector<1x1x1xf32>
    %135 = arith.subf %130, %134 : f32
    %136 = arith.maximumf %126, %135 : f32
    %cst_48 = arith.constant 0.00999999977 : f32
    %137 = arith.mulf %cst_48, %136 : f32
    %138 = arith.mulf %137, %137 : f32
    %cst_49 = arith.constant 3.000000e-02 : f32
    %139 = arith.mulf %cst_49, %136 : f32
    %140 = arith.mulf %139, %139 : f32
    %141 = arith.mulf %49, %49 : vector<10x10xf32>
    %142 = arith.subf %77, %141 : vector<10x10xf32>
    %cst_50 = arith.constant 1.02083337 : f32
    %143 = vector.broadcast %cst_50 : f32 to vector<10x10xf32>
    %144 = arith.mulf %143, %142 : vector<10x10xf32>
    %145 = arith.mulf %63, %63 : vector<10x10xf32>
    %146 = arith.subf %91, %145 : vector<10x10xf32>
    %cst_51 = arith.constant 1.02083337 : f32
    %147 = vector.broadcast %cst_51 : f32 to vector<10x10xf32>
    %148 = arith.mulf %147, %146 : vector<10x10xf32>
    %149 = arith.mulf %49, %63 : vector<10x10xf32>
    %150 = arith.subf %105, %149 : vector<10x10xf32>
    %cst_52 = arith.constant 1.02083337 : f32
    %151 = vector.broadcast %cst_52 : f32 to vector<10x10xf32>
    %152 = arith.mulf %151, %150 : vector<10x10xf32>
    %cst_53 = arith.constant 2.000000e+00 : f32
    %153 = vector.broadcast %cst_53 : f32 to vector<10x10xf32>
    %154 = arith.mulf %153, %49 : vector<10x10xf32>
    %155 = arith.mulf %154, %63 : vector<10x10xf32>
    %156 = vector.broadcast %138 : f32 to vector<10x10xf32>
    %157 = arith.addf %155, %156 : vector<10x10xf32>
    %cst_54 = arith.constant 2.000000e+00 : f32
    %158 = vector.broadcast %cst_54 : f32 to vector<10x10xf32>
    %159 = arith.mulf %158, %152 : vector<10x10xf32>
    %160 = vector.broadcast %140 : f32 to vector<10x10xf32>
    %161 = arith.addf %159, %160 : vector<10x10xf32>
    %162 = arith.mulf %49, %49 : vector<10x10xf32>
    %163 = arith.mulf %63, %63 : vector<10x10xf32>
    %164 = arith.addf %162, %163 : vector<10x10xf32>
    %165 = vector.broadcast %138 : f32 to vector<10x10xf32>
    %166 = arith.addf %164, %165 : vector<10x10xf32>
    %167 = arith.addf %144, %148 : vector<10x10xf32>
    %168 = vector.broadcast %140 : f32 to vector<10x10xf32>
    %169 = arith.addf %167, %168 : vector<10x10xf32>
    %170 = arith.mulf %157, %161 : vector<10x10xf32>
    %171 = arith.mulf %166, %169 : vector<10x10xf32>
    %172 = tpu.reciprocal %171 {approx = true} : vector<10x10xf32> -> vector<10x10xf32>
    %173 = arith.mulf %170, %172 : vector<10x10xf32>
    %cst_55 = arith.constant dense<0.000000e+00> : vector<10xf32>
    %174 = vector.multi_reduction <add>, %173, %cst_55 [0] : vector<10x10xf32> to vector<10xf32>
    %175 = vector.shape_cast %174 : vector<10xf32> to vector<1x10xf32>
    %176 = arith.addf %113, %175 : vector<1x10xf32>
    %177 = vector.extract_strided_slice %23 {offsets = [1, 0, 0], sizes = [1, 16, 16], strides = [1, 1, 1]} : vector<2x16x16xf32> to vector<1x16x16xf32>
    %178 = vector.shape_cast %177 : vector<1x16x16xf32> to vector<16x16xf32>
    %179 = vector.extract_strided_slice %25 {offsets = [1, 0, 0], sizes = [1, 16, 16], strides = [1, 1, 1]} : vector<2x16x16xf32> to vector<1x16x16xf32>
    %180 = vector.shape_cast %179 : vector<1x16x16xf32> to vector<16x16xf32>
    %181 = vector.shape_cast %180 : vector<16x16xf32> to vector<1x16x16xf32>
    %cst_56 = arith.constant dense<0xFF800000> : vector<1xf32>
    %182 = vector.multi_reduction <maximumf>, %181, %cst_56 [1, 2] : vector<1x16x16xf32> to vector<1xf32>
    %183 = vector.shape_cast %182 : vector<1xf32> to vector<1x1x1xf32>
    %184 = vector.extract %183[0, 0, 0] : f32 from vector<1x1x1xf32>
    %185 = vector.shape_cast %180 : vector<16x16xf32> to vector<1x16x16xf32>
    %cst_57 = arith.constant dense<0x7F800000> : vector<1xf32>
    %186 = vector.multi_reduction <minimumf>, %185, %cst_57 [1, 2] : vector<1x16x16xf32> to vector<1xf32>
    %187 = vector.shape_cast %186 : vector<1xf32> to vector<1x1x1xf32>
    %188 = vector.extract %187[0, 0, 0] : f32 from vector<1x1x1xf32>
    %189 = arith.subf %184, %188 : f32
    %190 = vector.shape_cast %178 : vector<16x16xf32> to vector<1x16x16xf32>
    %cst_58 = arith.constant dense<0xFF800000> : vector<1xf32>
    %191 = vector.multi_reduction <maximumf>, %190, %cst_58 [1, 2] : vector<1x16x16xf32> to vector<1xf32>
    %192 = vector.shape_cast %191 : vector<1xf32> to vector<1x1x1xf32>
    %193 = vector.extract %192[0, 0, 0] : f32 from vector<1x1x1xf32>
    %194 = vector.shape_cast %178 : vector<16x16xf32> to vector<1x16x16xf32>
    %cst_59 = arith.constant dense<0x7F800000> : vector<1xf32>
    %195 = vector.multi_reduction <minimumf>, %194, %cst_59 [1, 2] : vector<1x16x16xf32> to vector<1xf32>
    %196 = vector.shape_cast %195 : vector<1xf32> to vector<1x1x1xf32>
    %197 = vector.extract %196[0, 0, 0] : f32 from vector<1x1x1xf32>
    %198 = arith.subf %193, %197 : f32
    %199 = arith.maximumf %189, %198 : f32
    %cst_60 = arith.constant 0.00999999977 : f32
    %200 = arith.mulf %cst_60, %199 : f32
    %201 = arith.mulf %200, %200 : f32
    %cst_61 = arith.constant 3.000000e-02 : f32
    %202 = arith.mulf %cst_61, %199 : f32
    %203 = arith.mulf %202, %202 : f32
    %204 = arith.mulf %56, %56 : vector<10x10xf32>
    %205 = arith.subf %84, %204 : vector<10x10xf32>
    %cst_62 = arith.constant 1.02083337 : f32
    %206 = vector.broadcast %cst_62 : f32 to vector<10x10xf32>
    %207 = arith.mulf %206, %205 : vector<10x10xf32>
    %208 = arith.mulf %70, %70 : vector<10x10xf32>
    %209 = arith.subf %98, %208 : vector<10x10xf32>
    %cst_63 = arith.constant 1.02083337 : f32
    %210 = vector.broadcast %cst_63 : f32 to vector<10x10xf32>
    %211 = arith.mulf %210, %209 : vector<10x10xf32>
    %212 = arith.mulf %56, %70 : vector<10x10xf32>
    %213 = arith.subf %112, %212 : vector<10x10xf32>
    %cst_64 = arith.constant 1.02083337 : f32
    %214 = vector.broadcast %cst_64 : f32 to vector<10x10xf32>
    %215 = arith.mulf %214, %213 : vector<10x10xf32>
    %cst_65 = arith.constant 2.000000e+00 : f32
    %216 = vector.broadcast %cst_65 : f32 to vector<10x10xf32>
    %217 = arith.mulf %216, %56 : vector<10x10xf32>
    %218 = arith.mulf %217, %70 : vector<10x10xf32>
    %219 = vector.broadcast %201 : f32 to vector<10x10xf32>
    %220 = arith.addf %218, %219 : vector<10x10xf32>
    %cst_66 = arith.constant 2.000000e+00 : f32
    %221 = vector.broadcast %cst_66 : f32 to vector<10x10xf32>
    %222 = arith.mulf %221, %215 : vector<10x10xf32>
    %223 = vector.broadcast %203 : f32 to vector<10x10xf32>
    %224 = arith.addf %222, %223 : vector<10x10xf32>
    %225 = arith.mulf %56, %56 : vector<10x10xf32>
    %226 = arith.mulf %70, %70 : vector<10x10xf32>
    %227 = arith.addf %225, %226 : vector<10x10xf32>
    %228 = vector.broadcast %201 : f32 to vector<10x10xf32>
    %229 = arith.addf %227, %228 : vector<10x10xf32>
    %230 = arith.addf %207, %211 : vector<10x10xf32>
    %231 = vector.broadcast %203 : f32 to vector<10x10xf32>
    %232 = arith.addf %230, %231 : vector<10x10xf32>
    %233 = arith.mulf %220, %224 : vector<10x10xf32>
    %234 = arith.mulf %229, %232 : vector<10x10xf32>
    %235 = tpu.reciprocal %234 {approx = true} : vector<10x10xf32> -> vector<10x10xf32>
    %236 = arith.mulf %233, %235 : vector<10x10xf32>
    %cst_67 = arith.constant dense<0.000000e+00> : vector<10xf32>
    %237 = vector.multi_reduction <add>, %236, %cst_67 [0] : vector<10x10xf32> to vector<10xf32>
    %238 = vector.shape_cast %237 : vector<10xf32> to vector<1x10xf32>
    %239 = arith.addf %176, %238 : vector<1x10xf32>
    %240 = vector.shape_cast %239 : vector<1x10xf32> to vector<1x1x10xf32>
    %cst_68 = arith.constant dense<0.000000e+00> : vector<1xf32>
    %241 = vector.multi_reduction <add>, %240, %cst_68 [1, 2] : vector<1x1x10xf32> to vector<1xf32>
    %242 = vector.shape_cast %241 : vector<1xf32> to vector<1x1x1xf32>
    %243 = vector.extract %242[0, 0, 0] : f32 from vector<1x1x1xf32>
    %244 = vector.broadcast %243 : f32 to vector<1x1x8x128xf32>
    %c0_69 = arith.constant 0 : index
    %c0_70 = arith.constant 0 : index
    %c0_71 = arith.constant 0 : index
    %c0_72 = arith.constant 0 : index
    %245 = vector.load %arg4[%c0_69, %c0_70, %c0_71, %c0_72] : memref<1x1x8x128xf32, #tpu.memory_space<vmem>>, vector<1x1x8x128xf32>
    tpu.vector_store %arg4[%c0_69, %c0_70, %c0_71, %c0_72], %244 {strides = array<i32>} : memref<1x1x8x128xf32, #tpu.memory_space<vmem>>, vector<1x1x8x128xf32>,
    return
  }
  func.func @transform_0(%arg0: i32, %arg1: i32) -> (i32, i32, i32, i32) {
    %c0_i32 = arith.constant 0 : i32
    %c0_i32_0 = arith.constant 0 : i32
    %c0_i32_1 = arith.constant 0 : i32
    return %arg0, %arg1, %c0_i32, %c0_i32_0 : i32, i32, i32, i32
  }
  func.func @transform_1(%arg0: i32, %arg1: i32) -> (i32, i32, i32, i32) {
    %c0_i32 = arith.constant 0 : i32
    %c0_i32_0 = arith.constant 0 : i32
    %c0_i32_1 = arith.constant 0 : i32
    return %arg0, %arg1, %c0_i32, %c0_i32_0 : i32, i32, i32, i32
  }
  func.func @transform_2(%arg0: i32, %arg1: i32) -> (i32, i32, i32, i32) {
    %c0_i32 = arith.constant 0 : i32
    %c0_i32_0 = arith.constant 0 : i32
    %c0_i32_1 = arith.constant 0 : i32
    return %arg0, %arg1, %c0_i32, %c0_i32_0 : i32, i32, i32, i32
  }
}

</mosaic_0001>

<llo_original>
// kernel: ssim_loss_pallas.1
$region0: #{ssim_loss_pallas.1}
  #allocation0 [shape = 'u32[]', space=smem, size = 0x4, offset = 0x4, fixed_abs, tag = 'smem constant byte address 0x4 - core index']
  #allocation1 [shape = 'u32[144,128]{1,0:T(1,128)}', space=vmem, size = 0x12000, scoped, tag = 'internal scratch']
  %s0 = inlined_call_operand.hbm [shape: f32[2,4,16,16], index: 0, kind: input, shape index: {}]
  %s1 = inlined_call_operand.hbm [shape: f32[2,4,16,16], index: 1, kind: input, shape index: {}]
  %s2 = inlined_call_operand.vmem [shape: f32[2,2,8,128], index: 2, kind: output, shape index: {}]
  %s3 = sld [smem:[#allocation0]]
  $region49: #{ssim_loss_pallas.1} parent=0
    _
  %s5 = ssub.s32 1, %s3
  %s6 = scalar_select 0, %s5, %s3
  $region1: #{ssim_loss_pallas.1} parent=0
    #allocation2 [shape = 'u8[32768]{0}', space=vmem, size = 0x8000, scoped, tag = 'input window, operand 0']
    #allocation3 [shape = 's32[2]{0}', space=sflag, size = 0x8, scoped, tag = 'scoped memory for ssim_loss_pallas.1']
    #allocation4 [shape = 'u8[32768]{0}', space=vmem, size = 0x8000, scoped, tag = 'input window, operand 1']
    #allocation5 [shape = 's32[2]{0}', space=sflag, size = 0x8, scoped, tag = 'scoped memory for ssim_loss_pallas.1']
    %7 = vsyncpa [#allocation3], 0
    %s8 = scalar_lea.sflag [#allocation3], 1
    %9 = vsyncpa %s8, 0
    %10 = vsyncpa [#allocation5], 0
    %s11 = scalar_lea.sflag [#allocation5], 1
    %12 = vsyncpa %s11, 0
    loop: start=0, step=1, limit=6
    $region2: #{ssim_loss_pallas.1} parent=1 // loop_pre_header
      _
    $region3: #{ssim_loss_pallas.1} parent=1 // loop_header
      %s14 = sphi 0, %s18
      %p15 = scmp.ge.s32.totalorder %s14, 6
      %s21 = sphi 0, %s33
      %s22 = sphi 0, %s29
      %s23 = sphi 0, %s21
      %s24 = sphi 0, %s22
      %s25 = sphi 0, %s23
      %s26 = sphi 0, %s24
      %s38 = sphi 0, %s40
      %s41 = sphi 0, %s38
      %s42 = sphi 0, %s41
      %s58 = sphi 0, %s42
      %s66 = sphi 0, %s68
      %s69 = sphi 0, %s66
      %s70 = sphi 0, %s69
      %s86 = sphi 0, %s70
      %s94 = sphi 0, %s96
      %s97 = sphi 0, %s94
      %s98 = sphi 0, %s97
      %s114 = sphi 0, %s98
    $region4: #{ssim_loss_pallas.1} parent=1 // loop_header_branch
      %17 = sbr.rel (%p15) target = $region8
    $region5: #{ssim_loss_pallas.1} parent=1 // loop_body
      %s19 = ssub.s32 %s14, 1
      %s20 = ssub.s32 %s14, 2
      %s27 = sadd.s32 1, %s22
      %p28 = scmp.ge.s32.totalorder %s27, 2
      %s29 = scalar_select %p28, 0, %s27
      %s30 = sadd.s32 1, %s21
      %s31 = scalar_select %p28, %s30, %s21
      %p32 = scmp.ge.s32.totalorder %s31, 2
      %s33 = scalar_select %p32, 0, %s31
      %s34 = ssub.s32 %s21, %s33
      %s35 = ssub.s32 %s22, %s29
      %s36 = sor.u32 %s34, %s35
      %p37 = scmp.eq.s32.totalorder %s36, 0
      %s39 = sadd.s32 %s38, 1
      %s40 = scalar_select %p37, %s38, %s39
      %p43 = pneg %p37
      %p44 = scmp.eq.s32.totalorder %s14, 3
      %p45 = por %p43, %p44
      %p46 = scmp.ne.s32.totalorder %s38, %s41
      %p47 = scmp.eq.s32.totalorder %s14, 0
      %p48 = por %p46, %p47
      %p49 = scmp.ne.s32.totalorder %s38, %s41
      %p50 = scmp.eq.s32.totalorder %s19, 3
      %p51 = por %p49, %p50
      %p52 = scmp.ne.s32.totalorder %s41, %s42
      %p53 = scmp.eq.s32.totalorder %s19, 0
      %p54 = por %p52, %p53
      %p55 = scmp.ne.s32.totalorder %s41, %s42
      %p56 = scmp.eq.s32.totalorder %s20, 3
      %p57 = por %p55, %p56
      %p59 = scmp.ne.s32.totalorder %s42, %s58
      %p60 = scmp.eq.s32.totalorder %s20, 0
      %p61 = por %p59, %p60
      %s62 = ssub.s32 %s21, %s33
      %s63 = ssub.s32 %s22, %s29
      %s64 = sor.u32 %s62, %s63
      %p65 = scmp.eq.s32.totalorder %s64, 0
      %s67 = sadd.s32 %s66, 1
      %s68 = scalar_select %p65, %s66, %s67
      %p71 = pneg %p65
      %p72 = scmp.eq.s32.totalorder %s14, 3
      %p73 = por %p71, %p72
      %p74 = scmp.ne.s32.totalorder %s66, %s69
      %p75 = scmp.eq.s32.totalorder %s14, 0
      %p76 = por %p74, %p75
      %p77 = scmp.ne.s32.totalorder %s66, %s69
      %p78 = scmp.eq.s32.totalorder %s19, 3
      %p79 = por %p77, %p78
      %p80 = scmp.ne.s32.totalorder %s69, %s70
      %p81 = scmp.eq.s32.totalorder %s19, 0
      %p82 = por %p80, %p81
      %p83 = scmp.ne.s32.totalorder %s69, %s70
      %p84 = scmp.eq.s32.totalorder %s20, 3
      %p85 = por %p83, %p84
      %p87 = scmp.ne.s32.totalorder %s70, %s86
      %p88 = scmp.eq.s32.totalorder %s20, 0
      %p89 = por %p87, %p88
      %s90 = ssub.s32 %s21, %s33
      %s91 = ssub.s32 %s22, %s29
      %s92 = sor.u32 %s90, %s91
      %p93 = scmp.eq.s32.totalorder %s92, 0
      %s95 = sadd.s32 %s94, 1
      %s96 = scalar_select %p93, %s94, %s95
      %p99 = pneg %p93
      %p100 = scmp.eq.s32.totalorder %s14, 3
      %p101 = por %p99, %p100
      %p102 = scmp.ne.s32.totalorder %s94, %s97
      %p103 = scmp.eq.s32.totalorder %s14, 0
      %p104 = por %p102, %p103
      %p105 = scmp.ne.s32.totalorder %s94, %s97
      %p106 = scmp.eq.s32.totalorder %s19, 3
      %p107 = por %p105, %p106
      %p108 = scmp.ne.s32.totalorder %s97, %s98
      %p109 = scmp.eq.s32.totalorder %s19, 0
      %p110 = por %p108, %p109
      %p111 = scmp.ne.s32.totalorder %s97, %s98
      %p112 = scmp.eq.s32.totalorder %s20, 3
      %p113 = por %p111, %p112
      %p115 = scmp.ne.s32.totalorder %s98, %s114
      %p116 = scmp.eq.s32.totalorder %s20, 0
      %p117 = por %p115, %p116
      %p118 = scmp.le.s32.totalorder 1, %s14
      %p119 = scmp.lt.s32.totalorder %s14, 5
      %p120 = pnand %p118, %p119
      %p121 = pneg %p120
      // Predicated region
      $region9: #{ssim_loss_pallas.1} parent=5 // pred_check
        _
      $region10: #{ssim_loss_pallas.1} parent=5 // pred_check_branch
        %123 = sbr.rel (%p120) target = $region12
      $region11: #{ssim_loss_pallas.1} parent=5 // pred_region
        %s124 = ssub.s32 %s14, 1
      $region12: #{ssim_loss_pallas.1} parent=5 // pred_fallthru
        _
      %p125 = scmp.lt.s32.totalorder %s14, 4
      // Predicated region
      $region13: #{ssim_loss_pallas.1} parent=5 // pred_check
        %p126 = pneg %p125
      $region14: #{ssim_loss_pallas.1} parent=5 // pred_check_branch
        %128 = sbr.rel (%p126) target = $region16
      $region15: #{ssim_loss_pallas.1} parent=5 // pred_region
        // Predicated region
        $region17: #{ssim_loss_pallas.1} parent=15 // pred_check
          %p129 = pneg %p48
        $region18: #{ssim_loss_pallas.1} parent=15 // pred_check_branch
          %131 = sbr.rel (%p129) target = $region20
        $region19: #{ssim_loss_pallas.1} parent=15 // pred_region
          %s132 = sand.u32 %s38, 1
          %s133 = scalar_lea.sflag [#allocation3], %s132
          %s134 = sand.u32 %s38, 1
          %s135 = smul.addr %s134, 32
          %s136 = scalar_lea.vmem [#allocation2], %s135
          %s137 = smul.u32 2, %s22
          %s139 = ssub.s32 512, 512
          %140 = vsyncadd %s133, %s139
          %s141 = smul.addr %s137, 2
          %s142 = smul.addr %s21, 8
          %s143 = sadd.s32 %s141, %s142
          %s144 = smul.addr %s143, 128
          %s145 = scalar_lea.hbm %s0, %s144
          %s146 = sshll.u32 %s136, 4
          %s147 = int_to_ptr.vmem [resolvable:$true] %s146
          %152 = dma.hbm_to_vmem [thread:$0]  %s145, 512, %s147, %s133, 128, 128, 8
        $region20: #{ssim_loss_pallas.1} parent=15 // pred_fallthru
          _
        // Predicated region
        $region21: #{ssim_loss_pallas.1} parent=15 // pred_check
          %p153 = pneg %p76
        $region22: #{ssim_loss_pallas.1} parent=15 // pred_check_branch
          %155 = sbr.rel (%p153) target = $region24
        $region23: #{ssim_loss_pallas.1} parent=15 // pred_region
          %s156 = sand.u32 %s66, 1
          %s157 = scalar_lea.sflag [#allocation5], %s156
          %s158 = sand.u32 %s66, 1
          %s159 = smul.addr %s158, 32
          %s160 = scalar_lea.vmem [#allocation4], %s159
          %s161 = smul.u32 2, %s22
          %s163 = ssub.s32 512, 512
          %164 = vsyncadd %s157, %s163
          %s165 = smul.addr %s161, 2
          %s166 = smul.addr %s21, 8
          %s167 = sadd.s32 %s165, %s166
          %s168 = smul.addr %s167, 128
          %s169 = scalar_lea.hbm %s1, %s168
          %s170 = sshll.u32 %s160, 4
          %s171 = int_to_ptr.vmem [resolvable:$true] %s170
          %176 = dma.hbm_to_vmem [thread:$0]  %s169, 512, %s171, %s157, 128, 128, 8
        $region24: #{ssim_loss_pallas.1} parent=15 // pred_fallthru
          _
      $region16: #{ssim_loss_pallas.1} parent=5 // pred_fallthru
        _
      %p177 = scmp.le.s32.totalorder 1, %s14
      %p178 = scmp.lt.s32.totalorder %s14, 5
      %p179 = pnand %p177, %p178
      %p180 = pneg %p179
      // Predicated region
      $region25: #{ssim_loss_pallas.1} parent=5 // pred_check
        _
      $region26: #{ssim_loss_pallas.1} parent=5 // pred_check_branch
        %182 = sbr.rel (%p179) target = $region28
      $region27: #{ssim_loss_pallas.1} parent=5 // pred_region
        %s183 = ssub.s32 %s14, 1
        %s184 = sand.u32 %s41, 1
        %s185 = scalar_lea.sflag [#allocation3], %s184
        %s186 = sand.u32 %s41, 1
        %s187 = smul.addr %s186, 32
        %s188 = scalar_lea.vmem [#allocation2], %s187
        // Predicated region
        $region29: #{ssim_loss_pallas.1} parent=27 // pred_check
          %p189 = pneg %p54
        $region30: #{ssim_loss_pallas.1} parent=27 // pred_check_branch
          %191 = sbr.rel (%p189) target = $region32
        $region31: #{ssim_loss_pallas.1} parent=27 // pred_region
          %192 = dma.done %s185, 512
        $region32: #{ssim_loss_pallas.1} parent=27 // pred_fallthru
          _
        %s193 = sand.u32 %s69, 1
        %s194 = scalar_lea.sflag [#allocation5], %s193
        %s195 = sand.u32 %s69, 1
        %s196 = smul.addr %s195, 32
        %s197 = scalar_lea.vmem [#allocation4], %s196
        // Predicated region
        $region33: #{ssim_loss_pallas.1} parent=27 // pred_check
          %p198 = pneg %p82
        $region34: #{ssim_loss_pallas.1} parent=27 // pred_check_branch
          %200 = sbr.rel (%p198) target = $region36
        $region35: #{ssim_loss_pallas.1} parent=27 // pred_region
          %201 = dma.done %s194, 512
        $region36: #{ssim_loss_pallas.1} parent=27 // pred_fallthru
          _
        %s202 = sand.u32 %s41, 1
        %s203 = scalar_lea.sflag [#allocation3], %s202
        %s204 = sand.u32 %s41, 1
        %s205 = smul.addr %s204, 32
        %s206 = scalar_lea.vmem [#allocation2], %s205
        %p207 = pneg %p54
        %p208 = pneg %p51
        %s209 = sand.u32 %s69, 1
        %s210 = scalar_lea.sflag [#allocation5], %s209
        %s211 = sand.u32 %s69, 1
        %s212 = smul.addr %s211, 32
        %s213 = scalar_lea.vmem [#allocation4], %s212
        %p214 = pneg %p82
        %p215 = pneg %p79
        %p216 = pneg %p110
        %p217 = pneg %p107
        %p218 = scmp.lt.s32.totalorder %s23, 1
        %s219 = scalar_select %p218, %s23, 1
        %p220 = scmp.lt.s32.totalorder %s24, 1
        %s221 = scalar_select %p220, %s24, 1
        %s222 = smul.addr %s219, 2
        %s223 = sadd.s32 %s221, %s222
        %s224 = smul.addr %s223, 8
        %s225 = scalar_lea.vmem %s2, %s224
        %s226 = smul.u32 2, %s24
        %s227 = smul.u32 2, %s24
        %p228 = scmp.lt.s32.totalorder %s23, 1
        %s229 = scalar_select %p228, %s23, 1
        %p230 = scmp.lt.s32.totalorder %s24, 1
        %s231 = scalar_select %p230, %s24, 1
        %s232 = smul.addr %s229, 2
        %s233 = sadd.s32 %s231, %s232
        %s234 = smul.addr %s233, 8
        %s235 = scalar_lea.vmem %s2, %s234
        %v237 = vlaneseq
        %v238 = vshrl.u32 %v237, 7
        %v239 = vadd.s32 %v238, 8
        %v240 = vlaneseq
        %v241 = vand.u32 %v240, 127
        %vm242 = vcmp.ge.s32.totalorder %v238, %v241
        %vm243 = vcmp.ge.s32.totalorder %v239, %v241
        %v244 = vadd.s32 %v241, 7
        %vm245 = vcmp.lt.s32.totalorder %v238, %v244
        %vm246 = vcmp.lt.s32.totalorder %v239, %v244
        %vm247 = vmand %vm242, %vm245
        %vm248 = vmand %vm243, %vm246
        %v249 = vsel %vm247, 1.0, 0.0
        %v250 = vsel %vm248, 1.0, 0.0
        %v251 = vpack.c.bf16 %v250, %v249
        %vm252 = vcmp.ge.s32.totalorder %v241, %v238
        %vm253 = vcmp.ge.s32.totalorder %v241, %v239
        %v254 = vadd.s32 %v238, 7
        %v255 = vadd.s32 %v239, 7
        %vm256 = vcmp.lt.s32.totalorder %v241, %v254
        %vm257 = vcmp.lt.s32.totalorder %v241, %v255
        %vm258 = vmand %vm252, %vm256
        %vm259 = vmand %vm253, %vm257
        %v260 = vsel %vm258, 1.0, 0.0
        %v261 = vsel %vm259, 1.0, 0.0
        %v262 = vpack.c.bf16 %v261, %v260
        %v263 = vld [vmem:[%s188] sm:$0xff]
        %v264 = vld [vmem:[%s188 + $0x8] sm:$0xff]
        %v265 = vld [vmem:[%s188 + $0x10] sm:$0xff]
        %v266 = vld [vmem:[%s188 + $0x18] sm:$0xff]
        %v267 = vld [vmem:[%s197] sm:$0xff]
        %v268 = vld [vmem:[%s197 + $0x8] sm:$0xff]
        %v269 = vld [vmem:[%s197 + $0x10] sm:$0xff]
        %v270 = vld [vmem:[%s197 + $0x18] sm:$0xff]
        %v271 = vmul.f32 %v263, %v263
        %v272 = vmul.f32 %v264, %v264
        %v273 = vmul.f32 %v265, %v265
        %v274 = vmul.f32 %v266, %v266
        %v275 = vmul.f32 %v267, %v267
        %v276 = vmul.f32 %v268, %v268
        %v277 = vmul.f32 %v269, %v269
        %v278 = vmul.f32 %v270, %v270
        %v279 = vmul.f32 %v263, %v267
        %v280 = vmul.f32 %v264, %v268
        %v281 = vmul.f32 %v265, %v269
        %v282 = vmul.f32 %v266, %v270
        %v283 = vpack.c.bf16 %v264, %v263
        %v284 = vpack.c.bf16 %v266, %v265
        %v285 = vpack.c.bf16 %v268, %v267
        %v286 = vpack.c.bf16 %v270, %v269
        %v287 = vpack.c.bf16 %v272, %v271
        %v288 = vpack.c.bf16 %v274, %v273
        %v289 = vpack.c.bf16 %v276, %v275
        %v290 = vpack.c.bf16 %v278, %v277
        %v291 = vpack.c.bf16 %v280, %v279
        %v292 = vpack.c.bf16 %v282, %v281
        %v293 = vunpack.c.l.bf16 %v283
        %v294 = vunpack.c.h.bf16 %v283
        %v295 = vunpack.c.l.bf16 %v284
        %v296 = vunpack.c.h.bf16 %v284
        %v297 = vunpack.c.l.bf16 %v285
        %v298 = vunpack.c.h.bf16 %v285
        %v299 = vunpack.c.l.bf16 %v286
        %v300 = vunpack.c.h.bf16 %v286
        %v301 = vunpack.c.l.bf16 %v287
        %v302 = vunpack.c.h.bf16 %v287
        %v303 = vunpack.c.l.bf16 %v288
        %v304 = vunpack.c.h.bf16 %v288
        %v305 = vunpack.c.l.bf16 %v289
        %v306 = vunpack.c.h.bf16 %v289
        %v307 = vunpack.c.l.bf16 %v290
        %v308 = vunpack.c.h.bf16 %v290
        %v309 = vunpack.c.l.bf16 %v291
        %v310 = vunpack.c.h.bf16 %v291
        %v311 = vunpack.c.l.bf16 %v292
        %v312 = vunpack.c.h.bf16 %v292
        %v313 = vsub.f32 %v263, %v293
        %v314 = vsub.f32 %v264, %v294
        %v315 = vsub.f32 %v265, %v295
        %v316 = vsub.f32 %v266, %v296
        %v317 = vsub.f32 %v267, %v297
        %v318 = vsub.f32 %v268, %v298
        %v319 = vsub.f32 %v269, %v299
        %v320 = vsub.f32 %v270, %v300
        %v321 = vsub.f32 %v271, %v301
        %v322 = vsub.f32 %v272, %v302
        %v323 = vsub.f32 %v273, %v303
        %v324 = vsub.f32 %v274, %v304
        %v325 = vsub.f32 %v275, %v305
        %v326 = vsub.f32 %v276, %v306
        %v327 = vsub.f32 %v277, %v307
        %v328 = vsub.f32 %v278, %v308
        %v329 = vsub.f32 %v279, %v309
        %v330 = vsub.f32 %v280, %v310
        %v331 = vsub.f32 %v281, %v311
        %v332 = vsub.f32 %v282, %v312
        %v333 = vpack.c.bf16 %v314, %v313
        %v334 = vpack.c.bf16 %v316, %v315
        %v335 = vpack.c.bf16 %v318, %v317
        %v336 = vpack.c.bf16 %v320, %v319
        %v337 = vpack.c.bf16 %v322, %v321
        %v338 = vpack.c.bf16 %v324, %v323
        %v339 = vpack.c.bf16 %v326, %v325
        %v340 = vpack.c.bf16 %v328, %v327
        %v341 = vpack.c.bf16 %v330, %v329
        %v342 = vpack.c.bf16 %v332, %v331
        %vm343 = vcmask 130048
        %v345 = vsel %vm343, %v333, 0
        %v348 = vsel %vm343, %v334, 0
        %v351 = vsel %vm343, %v335, 0
        %v354 = vsel %vm343, %v336, 0
        %v357 = vsel %vm343, %v337, 0
        %v360 = vsel %vm343, %v338, 0
        %v363 = vsel %vm343, %v339, 0
        %v366 = vsel %vm343, %v340, 0
        %v369 = vsel %vm343, %v341, 0
        %v372 = vsel %vm343, %v342, 0
        %374 = vmatprep.subr.bf16.mxu0 0
        %375 = vmatpush1.bf16.msra.mxu0 0
        %376 = vmatprep.subr.bf16.mxu0 0
        %377 = vmatpush1.bf16.msra.mxu0 0
        %378 = vmatprep.subr.bf16.mxu0 0
        %379 = vmatpush1.bf16.msra.mxu0 0
        %380 = vmatprep.subr.bf16.mxu0 0
        %381 = vmatpush1.bf16.msra.mxu0 0
        %382 = vmatprep.subr.bf16.mxu0 0
        %383 = vmatpush1.bf16.msra.mxu0 0
        %384 = vmatprep.subr.bf16.mxu0 0
        %385 = vmatpush1.bf16.msra.mxu0 0
        %386 = vmatprep.subr.bf16.mxu0 0
        %387 = vmatpush1.bf16.msra.mxu0 0
        %388 = vmatprep.subr.bf16.mxu0 0
        %389 = vmatpush1.bf16.msra.mxu0 %v251
        %390 = vmatprep.subr.bf16.mxu0 0
        %391 = vmatpush2.bf16.msra.mxu0 0
        %392 = vmatprep.subr.bf16.mxu0 0
        %393 = vmatpush2.bf16.msra.mxu0 0
        %394 = vmatprep.subr.bf16.mxu0 0
        %395 = vmatpush2.bf16.msra.mxu0 0
        %396 = vmatprep.subr.bf16.mxu0 0
        %397 = vmatpush2.bf16.msra.mxu0 0
        %398 = vmatprep.subr.bf16.mxu0 0
        %399 = vmatpush2.bf16.msra.mxu0 0
        %400 = vmatprep.subr.bf16.mxu0 0
        %401 = vmatpush2.bf16.msra.mxu0 0
        %402 = vmatprep.subr.bf16.mxu0 0
        %403 = vmatpush2.bf16.msra.mxu0 0
        %404 = vmatprep.subr.bf16.mxu0 0
        %405 = vmatpush2.bf16.msra.mxu0 0
        %406 = vmatprep.mubr.bf16.mxu0 0
        %407 = vmatmul.mubr.bf16.gmra.mxu0 %v345
        %v408 = vpop.f32.mrf.mxu0
        %v409 = vadd.f32 0.0, %v408
        %v410 = vpop.f32.mrf.mxu0
        %v411 = vpop.f32.mrf.mxu0
        %v412 = vadd.f32 0.0, %v411
        %v413 = vpop.f32.mrf.mxu0
        %414 = vmatprep.mubr.bf16.mxu0 0
        %415 = vmatmul.mubr.bf16.gmra.mxu0 %v348
        %v416 = vpop.f32.mrf.mxu0
        %v417 = vadd.f32 0.0, %v416
        %v418 = vpop.f32.mrf.mxu0
        %v419 = vpop.f32.mrf.mxu0
        %v420 = vadd.f32 0.0, %v419
        %v421 = vpop.f32.mrf.mxu0
        %422 = vmatprep.mubr.bf16.mxu0 0
        %423 = vmatmul.mubr.bf16.gmra.mxu0 %v351
        %v424 = vpop.f32.mrf.mxu0
        %v425 = vadd.f32 0.0, %v424
        %v426 = vpop.f32.mrf.mxu0
        %v427 = vpop.f32.mrf.mxu0
        %v428 = vadd.f32 0.0, %v427
        %v429 = vpop.f32.mrf.mxu0
        %430 = vmatprep.mubr.bf16.mxu0 0
        %431 = vmatmul.mubr.bf16.gmra.mxu0 %v354
        %v432 = vpop.f32.mrf.mxu0
        %v433 = vadd.f32 0.0, %v432
        %v434 = vpop.f32.mrf.mxu0
        %v435 = vpop.f32.mrf.mxu0
        %v436 = vadd.f32 0.0, %v435
        %v437 = vpop.f32.mrf.mxu0
        %438 = vmatprep.mubr.bf16.mxu0 0
        %439 = vmatmul.mubr.bf16.gmra.mxu0 %v357
        %v440 = vpop.f32.mrf.mxu0
        %v441 = vadd.f32 0.0, %v440
        %v442 = vpop.f32.mrf.mxu0
        %v443 = vpop.f32.mrf.mxu0
        %v444 = vadd.f32 0.0, %v443
        %v445 = vpop.f32.mrf.mxu0
        %446 = vmatprep.mubr.bf16.mxu0 0
        %447 = vmatmul.mubr.bf16.gmra.mxu0 %v360
        %v448 = vpop.f32.mrf.mxu0
        %v449 = vadd.f32 0.0, %v448
        %v450 = vpop.f32.mrf.mxu0
        %v451 = vpop.f32.mrf.mxu0
        %v452 = vadd.f32 0.0, %v451
        %v453 = vpop.f32.mrf.mxu0
        %454 = vmatprep.mubr.bf16.mxu0 0
        %455 = vmatmul.mubr.bf16.gmra.mxu0 %v363
        %v456 = vpop.f32.mrf.mxu0
        %v457 = vadd.f32 0.0, %v456
        %v458 = vpop.f32.mrf.mxu0
        %v459 = vpop.f32.mrf.mxu0
        %v460 = vadd.f32 0.0, %v459
        %v461 = vpop.f32.mrf.mxu0
        %462 = vmatprep.mubr.bf16.mxu0 0
        %463 = vmatmul.mubr.bf16.gmra.mxu0 %v366
        %v464 = vpop.f32.mrf.mxu0
        %v465 = vadd.f32 0.0, %v464
        %v466 = vpop.f32.mrf.mxu0
        %v467 = vpop.f32.mrf.mxu0
        %v468 = vadd.f32 0.0, %v467
        %v469 = vpop.f32.mrf.mxu0
        %470 = vmatprep.mubr.bf16.mxu0 0
        %471 = vmatmul.mubr.bf16.gmra.mxu0 %v369
        %v472 = vpop.f32.mrf.mxu0
        %v473 = vadd.f32 0.0, %v472
        %v474 = vpop.f32.mrf.mxu0
        %v475 = vpop.f32.mrf.mxu0
        %v476 = vadd.f32 0.0, %v475
        %v477 = vpop.f32.mrf.mxu0
        %478 = vmatprep.mubr.bf16.mxu0 0
        %479 = vmatmul.mubr.bf16.gmra.mxu0 %v372
        %v480 = vpop.f32.mrf.mxu0
        %v481 = vadd.f32 0.0, %v480
        %v482 = vpop.f32.mrf.mxu0
        %v483 = vpop.f32.mrf.mxu0
        %v484 = vadd.f32 0.0, %v483
        %v485 = vpop.f32.mrf.mxu0
        %486 = vdwg.mxu0
        %v488 = vsel %vm343, %v283, 0
        %v491 = vsel %vm343, %v284, 0
        %v494 = vsel %vm343, %v285, 0
        %v497 = vsel %vm343, %v286, 0
        %v500 = vsel %vm343, %v287, 0
        %v503 = vsel %vm343, %v288, 0
        %v506 = vsel %vm343, %v289, 0
        %v509 = vsel %vm343, %v290, 0
        %v512 = vsel %vm343, %v291, 0
        %v515 = vsel %vm343, %v292, 0
        %517 = vmatprep.subr.bf16.mxu0 0
        %518 = vmatpush1.bf16.msra.mxu0 0
        %519 = vmatprep.subr.bf16.mxu0 0
        %520 = vmatpush1.bf16.msra.mxu0 0
        %521 = vmatprep.subr.bf16.mxu0 0
        %522 = vmatpush1.bf16.msra.mxu0 0
        %523 = vmatprep.subr.bf16.mxu0 0
        %524 = vmatpush1.bf16.msra.mxu0 0
        %525 = vmatprep.subr.bf16.mxu0 0
        %526 = vmatpush1.bf16.msra.mxu0 0
        %527 = vmatprep.subr.bf16.mxu0 0
        %528 = vmatpush1.bf16.msra.mxu0 0
        %529 = vmatprep.subr.bf16.mxu0 0
        %530 = vmatpush1.bf16.msra.mxu0 0
        %531 = vmatprep.subr.bf16.mxu0 0
        %532 = vmatpush1.bf16.msra.mxu0 %v251
        %533 = vmatprep.subr.bf16.mxu0 0
        %534 = vmatpush2.bf16.msra.mxu0 0
        %535 = vmatprep.subr.bf16.mxu0 0
        %536 = vmatpush2.bf16.msra.mxu0 0
        %537 = vmatprep.subr.bf16.mxu0 0
        %538 = vmatpush2.bf16.msra.mxu0 0
        %539 = vmatprep.subr.bf16.mxu0 0
        %540 = vmatpush2.bf16.msra.mxu0 0
        %541 = vmatprep.subr.bf16.mxu0 0
        %542 = vmatpush2.bf16.msra.mxu0 0
        %543 = vmatprep.subr.bf16.mxu0 0
        %544 = vmatpush2.bf16.msra.mxu0 0
        %545 = vmatprep.subr.bf16.mxu0 0
        %546 = vmatpush2.bf16.msra.mxu0 0
        %547 = vmatprep.subr.bf16.mxu0 0
        %548 = vmatpush2.bf16.msra.mxu0 0
        %549 = vmatprep.mubr.bf16.mxu0 0
        %550 = vmatmul.mubr.bf16.gmra.mxu0 %v488
        %v551 = vpop.f32.mrf.mxu0
        %v552 = vadd.f32 %v409, %v551
        %v553 = vpop.f32.mrf.mxu0
        %v554 = vpop.f32.mrf.mxu0
        %v555 = vadd.f32 %v412, %v554
        %v556 = vpop.f32.mrf.mxu0
        %557 = vmatprep.mubr.bf16.mxu0 0
        %558 = vmatmul.mubr.bf16.gmra.mxu0 %v491
        %v559 = vpop.f32.mrf.mxu0
        %v560 = vadd.f32 %v417, %v559
        %v561 = vpop.f32.mrf.mxu0
        %v562 = vpop.f32.mrf.mxu0
        %v563 = vadd.f32 %v420, %v562
        %v564 = vpop.f32.mrf.mxu0
        %565 = vmatprep.mubr.bf16.mxu0 0
        %566 = vmatmul.mubr.bf16.gmra.mxu0 %v494
        %v567 = vpop.f32.mrf.mxu0
        %v568 = vadd.f32 %v425, %v567
        %v569 = vpop.f32.mrf.mxu0
        %v570 = vpop.f32.mrf.mxu0
        %v571 = vadd.f32 %v428, %v570
        %v572 = vpop.f32.mrf.mxu0
        %573 = vmatprep.mubr.bf16.mxu0 0
        %574 = vmatmul.mubr.bf16.gmra.mxu0 %v497
        %v575 = vpop.f32.mrf.mxu0
        %v576 = vadd.f32 %v433, %v575
        %v577 = vpop.f32.mrf.mxu0
        %v578 = vpop.f32.mrf.mxu0
        %v579 = vadd.f32 %v436, %v578
        %v580 = vpop.f32.mrf.mxu0
        %581 = vmatprep.mubr.bf16.mxu0 0
        %582 = vmatmul.mubr.bf16.gmra.mxu0 %v500
        %v583 = vpop.f32.mrf.mxu0
        %v584 = vadd.f32 %v441, %v583
        %v585 = vpop.f32.mrf.mxu0
        %v586 = vpop.f32.mrf.mxu0
        %v587 = vadd.f32 %v444, %v586
        %v588 = vpop.f32.mrf.mxu0
        %589 = vmatprep.mubr.bf16.mxu0 0
        %590 = vmatmul.mubr.bf16.gmra.mxu0 %v503
        %v591 = vpop.f32.mrf.mxu0
        %v592 = vadd.f32 %v449, %v591
        %v593 = vpop.f32.mrf.mxu0
        %v594 = vpop.f32.mrf.mxu0
        %v595 = vadd.f32 %v452, %v594
        %v596 = vpop.f32.mrf.mxu0
        %597 = vmatprep.mubr.bf16.mxu0 0
        %598 = vmatmul.mubr.bf16.gmra.mxu0 %v506
        %v599 = vpop.f32.mrf.mxu0
        %v600 = vadd.f32 %v457, %v599
        %v601 = vpop.f32.mrf.mxu0
        %v602 = vpop.f32.mrf.mxu0
        %v603 = vadd.f32 %v460, %v602
        %v604 = vpop.f32.mrf.mxu0
        %605 = vmatprep.mubr.bf16.mxu0 0
        %606 = vmatmul.mubr.bf16.gmra.mxu0 %v509
        %v607 = vpop.f32.mrf.mxu0
        %v608 = vadd.f32 %v465, %v607
        %v609 = vpop.f32.mrf.mxu0
        %v610 = vpop.f32.mrf.mxu0
        %v611 = vadd.f32 %v468, %v610
        %v612 = vpop.f32.mrf.mxu0
        %613 = vmatprep.mubr.bf16.mxu0 0
        %614 = vmatmul.mubr.bf16.gmra.mxu0 %v512
        %v615 = vpop.f32.mrf.mxu0
        %v616 = vadd.f32 %v473, %v615
        %v617 = vpop.f32.mrf.mxu0
        %v618 = vpop.f32.mrf.mxu0
        %v619 = vadd.f32 %v476, %v618
        %v620 = vpop.f32.mrf.mxu0
        %621 = vmatprep.mubr.bf16.mxu0 0
        %622 = vmatmul.mubr.bf16.gmra.mxu0 %v515
        %v623 = vpop.f32.mrf.mxu0
        %v624 = vadd.f32 %v481, %v623
        %v625 = vpop.f32.mrf.mxu0
        %v626 = vpop.f32.mrf.mxu0
        %v627 = vadd.f32 %v484, %v626
        %v628 = vpop.f32.mrf.mxu0
        %629 = vdwg.mxu0
        %v630 = vpack.c.bf16 %v555, %v552
        %v631 = vpack.c.bf16 %v563, %v560
        %v632 = vpack.c.bf16 %v571, %v568
        %v633 = vpack.c.bf16 %v579, %v576
        %v634 = vpack.c.bf16 %v587, %v584
        %v635 = vpack.c.bf16 %v595, %v592
        %v636 = vpack.c.bf16 %v603, %v600
        %v637 = vpack.c.bf16 %v611, %v608
        %v638 = vpack.c.bf16 %v619, %v616
        %v639 = vpack.c.bf16 %v627, %v624
        %v640 = vunpack.c.l.bf16 %v630
        %v641 = vunpack.c.h.bf16 %v630
        %v642 = vunpack.c.l.bf16 %v631
        %v643 = vunpack.c.h.bf16 %v631
        %v644 = vunpack.c.l.bf16 %v632
        %v645 = vunpack.c.h.bf16 %v632
        %v646 = vunpack.c.l.bf16 %v633
        %v647 = vunpack.c.h.bf16 %v633
        %v648 = vunpack.c.l.bf16 %v634
        %v649 = vunpack.c.h.bf16 %v634
        %v650 = vunpack.c.l.bf16 %v635
        %v651 = vunpack.c.h.bf16 %v635
        %v652 = vunpack.c.l.bf16 %v636
        %v653 = vunpack.c.h.bf16 %v636
        %v654 = vunpack.c.l.bf16 %v637
        %v655 = vunpack.c.h.bf16 %v637
        %v656 = vunpack.c.l.bf16 %v638
        %v657 = vunpack.c.h.bf16 %v638
        %v658 = vunpack.c.l.bf16 %v639
        %v659 = vunpack.c.h.bf16 %v639
        %v660 = vsub.f32 %v552, %v640
        %v661 = vsub.f32 %v555, %v641
        %v662 = vsub.f32 %v560, %v642
        %v663 = vsub.f32 %v563, %v643
        %v664 = vsub.f32 %v568, %v644
        %v665 = vsub.f32 %v571, %v645
        %v666 = vsub.f32 %v576, %v646
        %v667 = vsub.f32 %v579, %v647
        %v668 = vsub.f32 %v584, %v648
        %v669 = vsub.f32 %v587, %v649
        %v670 = vsub.f32 %v592, %v650
        %v671 = vsub.f32 %v595, %v651
        %v672 = vsub.f32 %v600, %v652
        %v673 = vsub.f32 %v603, %v653
        %v674 = vsub.f32 %v608, %v654
        %v675 = vsub.f32 %v611, %v655
        %v676 = vsub.f32 %v616, %v656
        %v677 = vsub.f32 %v619, %v657
        %v678 = vsub.f32 %v624, %v658
        %v679 = vsub.f32 %v627, %v659
        %v680 = vpack.c.bf16 %v661, %v660
        %v681 = vpack.c.bf16 %v663, %v662
        %v682 = vpack.c.bf16 %v665, %v664
        %v683 = vpack.c.bf16 %v667, %v666
        %v684 = vpack.c.bf16 %v669, %v668
        %v685 = vpack.c.bf16 %v671, %v670
        %v686 = vpack.c.bf16 %v673, %v672
        %v687 = vpack.c.bf16 %v675, %v674
        %v688 = vpack.c.bf16 %v677, %v676
        %v689 = vpack.c.bf16 %v679, %v678
        %v691 = vsel %vm343, %v262, 0
        %693 = vmatprep.subr.bf16.mxu0 0
        %694 = vmatpush1.bf16.msra.mxu0 0
        %695 = vmatprep.subr.bf16.mxu0 0
        %696 = vmatpush1.bf16.msra.mxu0 0
        %697 = vmatprep.subr.bf16.mxu0 0
        %698 = vmatpush1.bf16.msra.mxu0 0
        %699 = vmatprep.subr.bf16.mxu0 0
        %700 = vmatpush1.bf16.msra.mxu0 0
        %701 = vmatprep.subr.bf16.mxu0 0
        %702 = vmatpush1.bf16.msra.mxu0 0
        %703 = vmatprep.subr.bf16.mxu0 0
        %704 = vmatpush1.bf16.msra.mxu0 0
        %705 = vmatprep.subr.bf16.mxu0 0
        %706 = vmatpush1.bf16.msra.mxu0 0
        %707 = vmatprep.subr.bf16.mxu0 0
        %708 = vmatpush1.bf16.msra.mxu0 %v680
        %709 = vmatprep.subr.bf16.mxu0 0
        %710 = vmatpush2.bf16.msra.mxu0 0
        %711 = vmatprep.subr.bf16.mxu0 0
        %712 = vmatpush2.bf16.msra.mxu0 0
        %713 = vmatprep.subr.bf16.mxu0 0
        %714 = vmatpush2.bf16.msra.mxu0 0
        %715 = vmatprep.subr.bf16.mxu0 0
        %716 = vmatpush2.bf16.msra.mxu0 0
        %717 = vmatprep.subr.bf16.mxu0 0
        %718 = vmatpush2.bf16.msra.mxu0 0
        %719 = vmatprep.subr.bf16.mxu0 0
        %720 = vmatpush2.bf16.msra.mxu0 0
        %721 = vmatprep.subr.bf16.mxu0 0
        %722 = vmatpush2.bf16.msra.mxu0 0
        %723 = vmatprep.subr.bf16.mxu0 0
        %724 = vmatpush2.bf16.msra.mxu0 0
        %725 = vmatprep.mubr.bf16.mxu0 0
        %726 = vmatmul.mubr.bf16.gmra.mxu0 %v691
        %v727 = vpop.f32.mrf.mxu0
        %v728 = vadd.f32 0.0, %v727
        %v729 = vpop.f32.mrf.mxu0
        %v730 = vpop.f32.mrf.mxu0
        %v731 = vadd.f32 0.0, %v730
        %v732 = vpop.f32.mrf.mxu0
        %733 = vdwg.mxu0
        %734 = vmatprep.subr.bf16.mxu0 0
        %735 = vmatpush1.bf16.msra.mxu0 0
        %736 = vmatprep.subr.bf16.mxu0 0
        %737 = vmatpush1.bf16.msra.mxu0 0
        %738 = vmatprep.subr.bf16.mxu0 0
        %739 = vmatpush1.bf16.msra.mxu0 0
        %740 = vmatprep.subr.bf16.mxu0 0
        %741 = vmatpush1.bf16.msra.mxu0 0
        %742 = vmatprep.subr.bf16.mxu0 0
        %743 = vmatpush1.bf16.msra.mxu0 0
        %744 = vmatprep.subr.bf16.mxu0 0
        %745 = vmatpush1.bf16.msra.mxu0 0
        %746 = vmatprep.subr.bf16.mxu0 0
        %747 = vmatpush1.bf16.msra.mxu0 0
        %748 = vmatprep.subr.bf16.mxu0 0
        %749 = vmatpush1.bf16.msra.mxu0 %v630
        %750 = vmatprep.subr.bf16.mxu0 0
        %751 = vmatpush2.bf16.msra.mxu0 0
        %752 = vmatprep.subr.bf16.mxu0 0
        %753 = vmatpush2.bf16.msra.mxu0 0
        %754 = vmatprep.subr.bf16.mxu0 0
        %755 = vmatpush2.bf16.msra.mxu0 0
        %756 = vmatprep.subr.bf16.mxu0 0
        %757 = vmatpush2.bf16.msra.mxu0 0
        %758 = vmatprep.subr.bf16.mxu0 0
        %759 = vmatpush2.bf16.msra.mxu0 0
        %760 = vmatprep.subr.bf16.mxu0 0
        %761 = vmatpush2.bf16.msra.mxu0 0
        %762 = vmatprep.subr.bf16.mxu0 0
        %763 = vmatpush2.bf16.msra.mxu0 0
        %764 = vmatprep.subr.bf16.mxu0 0
        %765 = vmatpush2.bf16.msra.mxu0 0
        %766 = vmatprep.mubr.bf16.mxu0 0
        %767 = vmatmul.mubr.bf16.gmra.mxu0 %v691
        %v768 = vpop.f32.mrf.mxu0
        %v769 = vadd.f32 %v728, %v768
        %v770 = vpop.f32.mrf.mxu0
        %v771 = vpop.f32.mrf.mxu0
        %v772 = vadd.f32 %v731, %v771
        %v773 = vpop.f32.mrf.mxu0
        %774 = vdwg.mxu0
        %v775 = vmul.f32 %v769, 0.020408163
        %v776 = vmul.f32 %v772, 0.020408163
        %777 = vmatprep.subr.bf16.mxu0 0
        %778 = vmatpush1.bf16.msra.mxu0 0
        %779 = vmatprep.subr.bf16.mxu0 0
        %780 = vmatpush1.bf16.msra.mxu0 0
        %781 = vmatprep.subr.bf16.mxu0 0
        %782 = vmatpush1.bf16.msra.mxu0 0
        %783 = vmatprep.subr.bf16.mxu0 0
        %784 = vmatpush1.bf16.msra.mxu0 0
        %785 = vmatprep.subr.bf16.mxu0 0
        %786 = vmatpush1.bf16.msra.mxu0 0
        %787 = vmatprep.subr.bf16.mxu0 0
        %788 = vmatpush1.bf16.msra.mxu0 0
        %789 = vmatprep.subr.bf16.mxu0 0
        %790 = vmatpush1.bf16.msra.mxu0 0
        %791 = vmatprep.subr.bf16.mxu0 0
        %792 = vmatpush1.bf16.msra.mxu0 %v681
        %793 = vmatprep.subr.bf16.mxu0 0
        %794 = vmatpush2.bf16.msra.mxu0 0
        %795 = vmatprep.subr.bf16.mxu0 0
        %796 = vmatpush2.bf16.msra.mxu0 0
        %797 = vmatprep.subr.bf16.mxu0 0
        %798 = vmatpush2.bf16.msra.mxu0 0
        %799 = vmatprep.subr.bf16.mxu0 0
        %800 = vmatpush2.bf16.msra.mxu0 0
        %801 = vmatprep.subr.bf16.mxu0 0
        %802 = vmatpush2.bf16.msra.mxu0 0
        %803 = vmatprep.subr.bf16.mxu0 0
        %804 = vmatpush2.bf16.msra.mxu0 0
        %805 = vmatprep.subr.bf16.mxu0 0
        %806 = vmatpush2.bf16.msra.mxu0 0
        %807 = vmatprep.subr.bf16.mxu0 0
        %808 = vmatpush2.bf16.msra.mxu0 0
        %809 = vmatprep.mubr.bf16.mxu0 0
        %810 = vmatmul.mubr.bf16.gmra.mxu0 %v691
        %v811 = vpop.f32.mrf.mxu0
        %v812 = vadd.f32 0.0, %v811
        %v813 = vpop.f32.mrf.mxu0
        %v814 = vpop.f32.mrf.mxu0
        %v815 = vadd.f32 0.0, %v814
        %v816 = vpop.f32.mrf.mxu0
        %817 = vdwg.mxu0
        %818 = vmatprep.subr.bf16.mxu0 0
        %819 = vmatpush1.bf16.msra.mxu0 0
        %820 = vmatprep.subr.bf16.mxu0 0
        %821 = vmatpush1.bf16.msra.mxu0 0
        %822 = vmatprep.subr.bf16.mxu0 0
        %823 = vmatpush1.bf16.msra.mxu0 0
        %824 = vmatprep.subr.bf16.mxu0 0
        %825 = vmatpush1.bf16.msra.mxu0 0
        %826 = vmatprep.subr.bf16.mxu0 0
        %827 = vmatpush1.bf16.msra.mxu0 0
        %828 = vmatprep.subr.bf16.mxu0 0
        %829 = vmatpush1.bf16.msra.mxu0 0
        %830 = vmatprep.subr.bf16.mxu0 0
        %831 = vmatpush1.bf16.msra.mxu0 0
        %832 = vmatprep.subr.bf16.mxu0 0
        %833 = vmatpush1.bf16.msra.mxu0 %v631
        %834 = vmatprep.subr.bf16.mxu0 0
        %835 = vmatpush2.bf16.msra.mxu0 0
        %836 = vmatprep.subr.bf16.mxu0 0
        %837 = vmatpush2.bf16.msra.mxu0 0
        %838 = vmatprep.subr.bf16.mxu0 0
        %839 = vmatpush2.bf16.msra.mxu0 0
        %840 = vmatprep.subr.bf16.mxu0 0
        %841 = vmatpush2.bf16.msra.mxu0 0
        %842 = vmatprep.subr.bf16.mxu0 0
        %843 = vmatpush2.bf16.msra.mxu0 0
        %844 = vmatprep.subr.bf16.mxu0 0
        %845 = vmatpush2.bf16.msra.mxu0 0
        %846 = vmatprep.subr.bf16.mxu0 0
        %847 = vmatpush2.bf16.msra.mxu0 0
        %848 = vmatprep.subr.bf16.mxu0 0
        %849 = vmatpush2.bf16.msra.mxu0 0
        %850 = vmatprep.mubr.bf16.mxu0 0
        %851 = vmatmul.mubr.bf16.gmra.mxu0 %v691
        %v852 = vpop.f32.mrf.mxu0
        %v853 = vadd.f32 %v812, %v852
        %v854 = vpop.f32.mrf.mxu0
        %v855 = vpop.f32.mrf.mxu0
        %v856 = vadd.f32 %v815, %v855
        %v857 = vpop.f32.mrf.mxu0
        %858 = vdwg.mxu0
        %v859 = vmul.f32 %v853, 0.020408163
        %v860 = vmul.f32 %v856, 0.020408163
        %861 = vmatprep.subr.bf16.mxu0 0
        %862 = vmatpush1.bf16.msra.mxu0 0
        %863 = vmatprep.subr.bf16.mxu0 0
        %864 = vmatpush1.bf16.msra.mxu0 0
        %865 = vmatprep.subr.bf16.mxu0 0
        %866 = vmatpush1.bf16.msra.mxu0 0
        %867 = vmatprep.subr.bf16.mxu0 0
        %868 = vmatpush1.bf16.msra.mxu0 0
        %869 = vmatprep.subr.bf16.mxu0 0
        %870 = vmatpush1.bf16.msra.mxu0 0
        %871 = vmatprep.subr.bf16.mxu0 0
        %872 = vmatpush1.bf16.msra.mxu0 0
        %873 = vmatprep.subr.bf16.mxu0 0
        %874 = vmatpush1.bf16.msra.mxu0 0
        %875 = vmatprep.subr.bf16.mxu0 0
        %876 = vmatpush1.bf16.msra.mxu0 %v682
        %877 = vmatprep.subr.bf16.mxu0 0
        %878 = vmatpush2.bf16.msra.mxu0 0
        %879 = vmatprep.subr.bf16.mxu0 0
        %880 = vmatpush2.bf16.msra.mxu0 0
        %881 = vmatprep.subr.bf16.mxu0 0
        %882 = vmatpush2.bf16.msra.mxu0 0
        %883 = vmatprep.subr.bf16.mxu0 0
        %884 = vmatpush2.bf16.msra.mxu0 0
        %885 = vmatprep.subr.bf16.mxu0 0
        %886 = vmatpush2.bf16.msra.mxu0 0
        %887 = vmatprep.subr.bf16.mxu0 0
        %888 = vmatpush2.bf16.msra.mxu0 0
        %889 = vmatprep.subr.bf16.mxu0 0
        %890 = vmatpush2.bf16.msra.mxu0 0
        %891 = vmatprep.subr.bf16.mxu0 0
        %892 = vmatpush2.bf16.msra.mxu0 0
        %893 = vmatprep.mubr.bf16.mxu0 0
        %894 = vmatmul.mubr.bf16.gmra.mxu0 %v691
        %v895 = vpop.f32.mrf.mxu0
        %v896 = vadd.f32 0.0, %v895
        %v897 = vpop.f32.mrf.mxu0
        %v898 = vpop.f32.mrf.mxu0
        %v899 = vadd.f32 0.0, %v898
        %v900 = vpop.f32.mrf.mxu0
        %901 = vdwg.mxu0
        %902 = vmatprep.subr.bf16.mxu0 0
        %903 = vmatpush1.bf16.msra.mxu0 0
        %904 = vmatprep.subr.bf16.mxu0 0
        %905 = vmatpush1.bf16.msra.mxu0 0
        %906 = vmatprep.subr.bf16.mxu0 0
        %907 = vmatpush1.bf16.msra.mxu0 0
        %908 = vmatprep.subr.bf16.mxu0 0
        %909 = vmatpush1.bf16.msra.mxu0 0
        %910 = vmatprep.subr.bf16.mxu0 0
        %911 = vmatpush1.bf16.msra.mxu0 0
        %912 = vmatprep.subr.bf16.mxu0 0
        %913 = vmatpush1.bf16.msra.mxu0 0
        %914 = vmatprep.subr.bf16.mxu0 0
        %915 = vmatpush1.bf16.msra.mxu0 0
        %916 = vmatprep.subr.bf16.mxu0 0
        %917 = vmatpush1.bf16.msra.mxu0 %v632
        %918 = vmatprep.subr.bf16.mxu0 0
        %919 = vmatpush2.bf16.msra.mxu0 0
        %920 = vmatprep.subr.bf16.mxu0 0
        %921 = vmatpush2.bf16.msra.mxu0 0
        %922 = vmatprep.subr.bf16.mxu0 0
        %923 = vmatpush2.bf16.msra.mxu0 0
        %924 = vmatprep.subr.bf16.mxu0 0
        %925 = vmatpush2.bf16.msra.mxu0 0
        %926 = vmatprep.subr.bf16.mxu0 0
        %927 = vmatpush2.bf16.msra.mxu0 0
        %928 = vmatprep.subr.bf16.mxu0 0
        %929 = vmatpush2.bf16.msra.mxu0 0
        %930 = vmatprep.subr.bf16.mxu0 0
        %931 = vmatpush2.bf16.msra.mxu0 0
        %932 = vmatprep.subr.bf16.mxu0 0
        %933 = vmatpush2.bf16.msra.mxu0 0
        %934 = vmatprep.mubr.bf16.mxu0 0
        %935 = vmatmul.mubr.bf16.gmra.mxu0 %v691
        %v936 = vpop.f32.mrf.mxu0
        %v937 = vadd.f32 %v896, %v936
        %v938 = vpop.f32.mrf.mxu0
        %v939 = vpop.f32.mrf.mxu0
        %v940 = vadd.f32 %v899, %v939
        %v941 = vpop.f32.mrf.mxu0
        %942 = vdwg.mxu0
        %v943 = vmul.f32 %v937, 0.020408163
        %v944 = vmul.f32 %v940, 0.020408163
        %945 = vmatprep.subr.bf16.mxu0 0
        %946 = vmatpush1.bf16.msra.mxu0 0
        %947 = vmatprep.subr.bf16.mxu0 0
        %948 = vmatpush1.bf16.msra.mxu0 0
        %949 = vmatprep.subr.bf16.mxu0 0
        %950 = vmatpush1.bf16.msra.mxu0 0
        %951 = vmatprep.subr.bf16.mxu0 0
        %952 = vmatpush1.bf16.msra.mxu0 0
        %953 = vmatprep.subr.bf16.mxu0 0
        %954 = vmatpush1.bf16.msra.mxu0 0
        %955 = vmatprep.subr.bf16.mxu0 0
        %956 = vmatpush1.bf16.msra.mxu0 0
        %957 = vmatprep.subr.bf16.mxu0 0
        %958 = vmatpush1.bf16.msra.mxu0 0
        %959 = vmatprep.subr.bf16.mxu0 0
        %960 = vmatpush1.bf16.msra.mxu0 %v683
        %961 = vmatprep.subr.bf16.mxu0 0
        %962 = vmatpush2.bf16.msra.mxu0 0
        %963 = vmatprep.subr.bf16.mxu0 0
        %964 = vmatpush2.bf16.msra.mxu0 0
        %965 = vmatprep.subr.bf16.mxu0 0
        %966 = vmatpush2.bf16.msra.mxu0 0
        %967 = vmatprep.subr.bf16.mxu0 0
        %968 = vmatpush2.bf16.msra.mxu0 0
        %969 = vmatprep.subr.bf16.mxu0 0
        %970 = vmatpush2.bf16.msra.mxu0 0
        %971 = vmatprep.subr.bf16.mxu0 0
        %972 = vmatpush2.bf16.msra.mxu0 0
        %973 = vmatprep.subr.bf16.mxu0 0
        %974 = vmatpush2.bf16.msra.mxu0 0
        %975 = vmatprep.subr.bf16.mxu0 0
        %976 = vmatpush2.bf16.msra.mxu0 0
        %977 = vmatprep.mubr.bf16.mxu0 0
        %978 = vmatmul.mubr.bf16.gmra.mxu0 %v691
        %v979 = vpop.f32.mrf.mxu0
        %v980 = vadd.f32 0.0, %v979
        %v981 = vpop.f32.mrf.mxu0
        %v982 = vpop.f32.mrf.mxu0
        %v983 = vadd.f32 0.0, %v982
        %v984 = vpop.f32.mrf.mxu0
        %985 = vdwg.mxu0
        %986 = vmatprep.subr.bf16.mxu0 0
        %987 = vmatpush1.bf16.msra.mxu0 0
        %988 = vmatprep.subr.bf16.mxu0 0
        %989 = vmatpush1.bf16.msra.mxu0 0
        %990 = vmatprep.subr.bf16.mxu0 0
        %991 = vmatpush1.bf16.msra.mxu0 0
        %992 = vmatprep.subr.bf16.mxu0 0
        %993 = vmatpush1.bf16.msra.mxu0 0
        %994 = vmatprep.subr.bf16.mxu0 0
        %995 = vmatpush1.bf16.msra.mxu0 0
        %996 = vmatprep.subr.bf16.mxu0 0
        %997 = vmatpush1.bf16.msra.mxu0 0
        %998 = vmatprep.subr.bf16.mxu0 0
        %999 = vmatpush1.bf16.msra.mxu0 0
        %1000 = vmatprep.subr.bf16.mxu0 0
        %1001 = vmatpush1.bf16.msra.mxu0 %v633
        %1002 = vmatprep.subr.bf16.mxu0 0
        %1003 = vmatpush2.bf16.msra.mxu0 0
        %1004 = vmatprep.subr.bf16.mxu0 0
        %1005 = vmatpush2.bf16.msra.mxu0 0
        %1006 = vmatprep.subr.bf16.mxu0 0
        %1007 = vmatpush2.bf16.msra.mxu0 0
        %1008 = vmatprep.subr.bf16.mxu0 0
        %1009 = vmatpush2.bf16.msra.mxu0 0
        %1010 = vmatprep.subr.bf16.mxu0 0
        %1011 = vmatpush2.bf16.msra.mxu0 0
        %1012 = vmatprep.subr.bf16.mxu0 0
        %1013 = vmatpush2.bf16.msra.mxu0 0
        %1014 = vmatprep.subr.bf16.mxu0 0
        %1015 = vmatpush2.bf16.msra.mxu0 0
        %1016 = vmatprep.subr.bf16.mxu0 0
        %1017 = vmatpush2.bf16.msra.mxu0 0
        %1018 = vmatprep.mubr.bf16.mxu0 0
        %1019 = vmatmul.mubr.bf16.gmra.mxu0 %v691
        %v1020 = vpop.f32.mrf.mxu0
        %v1021 = vadd.f32 %v980, %v1020
        %v1022 = vpop.f32.mrf.mxu0
        %v1023 = vpop.f32.mrf.mxu0
        %v1024 = vadd.f32 %v983, %v1023
        %v1025 = vpop.f32.mrf.mxu0
        %1026 = vdwg.mxu0
        %v1027 = vmul.f32 %v1021, 0.020408163
        %v1028 = vmul.f32 %v1024, 0.020408163
        %1029 = vmatprep.subr.bf16.mxu0 0
        %1030 = vmatpush1.bf16.msra.mxu0 0
        %1031 = vmatprep.subr.bf16.mxu0 0
        %1032 = vmatpush1.bf16.msra.mxu0 0
        %1033 = vmatprep.subr.bf16.mxu0 0
        %1034 = vmatpush1.bf16.msra.mxu0 0
        %1035 = vmatprep.subr.bf16.mxu0 0
        %1036 = vmatpush1.bf16.msra.mxu0 0
        %1037 = vmatprep.subr.bf16.mxu0 0
        %1038 = vmatpush1.bf16.msra.mxu0 0
        %1039 = vmatprep.subr.bf16.mxu0 0
        %1040 = vmatpush1.bf16.msra.mxu0 0
        %1041 = vmatprep.subr.bf16.mxu0 0
        %1042 = vmatpush1.bf16.msra.mxu0 0
        %1043 = vmatprep.subr.bf16.mxu0 0
        %1044 = vmatpush1.bf16.msra.mxu0 %v684
        %1045 = vmatprep.subr.bf16.mxu0 0
        %1046 = vmatpush2.bf16.msra.mxu0 0
        %1047 = vmatprep.subr.bf16.mxu0 0
        %1048 = vmatpush2.bf16.msra.mxu0 0
        %1049 = vmatprep.subr.bf16.mxu0 0
        %1050 = vmatpush2.bf16.msra.mxu0 0
        %1051 = vmatprep.subr.bf16.mxu0 0
        %1052 = vmatpush2.bf16.msra.mxu0 0
        %1053 = vmatprep.subr.bf16.mxu0 0
        %1054 = vmatpush2.bf16.msra.mxu0 0
        %1055 = vmatprep.subr.bf16.mxu0 0
        %1056 = vmatpush2.bf16.msra.mxu0 0
        %1057 = vmatprep.subr.bf16.mxu0 0
        %1058 = vmatpush2.bf16.msra.mxu0 0
        %1059 = vmatprep.subr.bf16.mxu0 0
        %1060 = vmatpush2.bf16.msra.mxu0 0
        %1061 = vmatprep.mubr.bf16.mxu0 0
        %1062 = vmatmul.mubr.bf16.gmra.mxu0 %v691
        %v1063 = vpop.f32.mrf.mxu0
        %v1064 = vadd.f32 0.0, %v1063
        %v1065 = vpop.f32.mrf.mxu0
        %v1066 = vpop.f32.mrf.mxu0
        %v1067 = vadd.f32 0.0, %v1066
        %v1068 = vpop.f32.mrf.mxu0
        %1069 = vdwg.mxu0
        %1070 = vmatprep.subr.bf16.mxu0 0
        %1071 = vmatpush1.bf16.msra.mxu0 0
        %1072 = vmatprep.subr.bf16.mxu0 0
        %1073 = vmatpush1.bf16.msra.mxu0 0
        %1074 = vmatprep.subr.bf16.mxu0 0
        %1075 = vmatpush1.bf16.msra.mxu0 0
        %1076 = vmatprep.subr.bf16.mxu0 0
        %1077 = vmatpush1.bf16.msra.mxu0 0
        %1078 = vmatprep.subr.bf16.mxu0 0
        %1079 = vmatpush1.bf16.msra.mxu0 0
        %1080 = vmatprep.subr.bf16.mxu0 0
        %1081 = vmatpush1.bf16.msra.mxu0 0
        %1082 = vmatprep.subr.bf16.mxu0 0
        %1083 = vmatpush1.bf16.msra.mxu0 0
        %1084 = vmatprep.subr.bf16.mxu0 0
        %1085 = vmatpush1.bf16.msra.mxu0 %v634
        %1086 = vmatprep.subr.bf16.mxu0 0
        %1087 = vmatpush2.bf16.msra.mxu0 0
        %1088 = vmatprep.subr.bf16.mxu0 0
        %1089 = vmatpush2.bf16.msra.mxu0 0
        %1090 = vmatprep.subr.bf16.mxu0 0
        %1091 = vmatpush2.bf16.msra.mxu0 0
        %1092 = vmatprep.subr.bf16.mxu0 0
        %1093 = vmatpush2.bf16.msra.mxu0 0
        %1094 = vmatprep.subr.bf16.mxu0 0
        %1095 = vmatpush2.bf16.msra.mxu0 0
        %1096 = vmatprep.subr.bf16.mxu0 0
        %1097 = vmatpush2.bf16.msra.mxu0 0
        %1098 = vmatprep.subr.bf16.mxu0 0
        %1099 = vmatpush2.bf16.msra.mxu0 0
        %1100 = vmatprep.subr.bf16.mxu0 0
        %1101 = vmatpush2.bf16.msra.mxu0 0
        %1102 = vmatprep.mubr.bf16.mxu0 0
        %1103 = vmatmul.mubr.bf16.gmra.mxu0 %v691
        %v1104 = vpop.f32.mrf.mxu0
        %v1105 = vadd.f32 %v1064, %v1104
        %v1106 = vpop.f32.mrf.mxu0
        %v1107 = vpop.f32.mrf.mxu0
        %v1108 = vadd.f32 %v1067, %v1107
        %v1109 = vpop.f32.mrf.mxu0
        %1110 = vdwg.mxu0
        %v1111 = vmul.f32 %v1105, 0.020408163
        %v1112 = vmul.f32 %v1108, 0.020408163
        %1113 = vmatprep.subr.bf16.mxu0 0
        %1114 = vmatpush1.bf16.msra.mxu0 0
        %1115 = vmatprep.subr.bf16.mxu0 0
        %1116 = vmatpush1.bf16.msra.mxu0 0
        %1117 = vmatprep.subr.bf16.mxu0 0
        %1118 = vmatpush1.bf16.msra.mxu0 0
        %1119 = vmatprep.subr.bf16.mxu0 0
        %1120 = vmatpush1.bf16.msra.mxu0 0
        %1121 = vmatprep.subr.bf16.mxu0 0
        %1122 = vmatpush1.bf16.msra.mxu0 0
        %1123 = vmatprep.subr.bf16.mxu0 0
        %1124 = vmatpush1.bf16.msra.mxu0 0
        %1125 = vmatprep.subr.bf16.mxu0 0
        %1126 = vmatpush1.bf16.msra.mxu0 0
        %1127 = vmatprep.subr.bf16.mxu0 0
        %1128 = vmatpush1.bf16.msra.mxu0 %v685
        %1129 = vmatprep.subr.bf16.mxu0 0
        %1130 = vmatpush2.bf16.msra.mxu0 0
        %1131 = vmatprep.subr.bf16.mxu0 0
        %1132 = vmatpush2.bf16.msra.mxu0 0
        %1133 = vmatprep.subr.bf16.mxu0 0
        %1134 = vmatpush2.bf16.msra.mxu0 0
        %1135 = vmatprep.subr.bf16.mxu0 0
        %1136 = vmatpush2.bf16.msra.mxu0 0
        %1137 = vmatprep.subr.bf16.mxu0 0
        %1138 = vmatpush2.bf16.msra.mxu0 0
        %1139 = vmatprep.subr.bf16.mxu0 0
        %1140 = vmatpush2.bf16.msra.mxu0 0
        %1141 = vmatprep.subr.bf16.mxu0 0
        %1142 = vmatpush2.bf16.msra.mxu0 0
        %1143 = vmatprep.subr.bf16.mxu0 0
        %1144 = vmatpush2.bf16.msra.mxu0 0
        %1145 = vmatprep.mubr.bf16.mxu0 0
        %1146 = vmatmul.mubr.bf16.gmra.mxu0 %v691
        %v1147 = vpop.f32.mrf.mxu0
        %v1148 = vadd.f32 0.0, %v1147
        %v1149 = vpop.f32.mrf.mxu0
        %v1150 = vpop.f32.mrf.mxu0
        %v1151 = vadd.f32 0.0, %v1150
        %v1152 = vpop.f32.mrf.mxu0
        %1153 = vdwg.mxu0
        %1154 = vmatprep.subr.bf16.mxu0 0
        %1155 = vmatpush1.bf16.msra.mxu0 0
        %1156 = vmatprep.subr.bf16.mxu0 0
        %1157 = vmatpush1.bf16.msra.mxu0 0
        %1158 = vmatprep.subr.bf16.mxu0 0
        %1159 = vmatpush1.bf16.msra.mxu0 0
        %1160 = vmatprep.subr.bf16.mxu0 0
        %1161 = vmatpush1.bf16.msra.mxu0 0
        %1162 = vmatprep.subr.bf16.mxu0 0
        %1163 = vmatpush1.bf16.msra.mxu0 0
        %1164 = vmatprep.subr.bf16.mxu0 0
        %1165 = vmatpush1.bf16.msra.mxu0 0
        %1166 = vmatprep.subr.bf16.mxu0 0
        %1167 = vmatpush1.bf16.msra.mxu0 0
        %1168 = vmatprep.subr.bf16.mxu0 0
        %1169 = vmatpush1.bf16.msra.mxu0 %v635
        %1170 = vmatprep.subr.bf16.mxu0 0
        %1171 = vmatpush2.bf16.msra.mxu0 0
        %1172 = vmatprep.subr.bf16.mxu0 0
        %1173 = vmatpush2.bf16.msra.mxu0 0
        %1174 = vmatprep.subr.bf16.mxu0 0
        %1175 = vmatpush2.bf16.msra.mxu0 0
        %1176 = vmatprep.subr.bf16.mxu0 0
        %1177 = vmatpush2.bf16.msra.mxu0 0
        %1178 = vmatprep.subr.bf16.mxu0 0
        %1179 = vmatpush2.bf16.msra.mxu0 0
        %1180 = vmatprep.subr.bf16.mxu0 0
        %1181 = vmatpush2.bf16.msra.mxu0 0
        %1182 = vmatprep.subr.bf16.mxu0 0
        %1183 = vmatpush2.bf16.msra.mxu0 0
        %1184 = vmatprep.subr.bf16.mxu0 0
        %1185 = vmatpush2.bf16.msra.mxu0 0
        %1186 = vmatprep.mubr.bf16.mxu0 0
        %1187 = vmatmul.mubr.bf16.gmra.mxu0 %v691
        %v1188 = vpop.f32.mrf.mxu0
        %v1189 = vadd.f32 %v1148, %v1188
        %v1190 = vpop.f32.mrf.mxu0
        %v1191 = vpop.f32.mrf.mxu0
        %v1192 = vadd.f32 %v1151, %v1191
        %v1193 = vpop.f32.mrf.mxu0
        %1194 = vdwg.mxu0
        %v1195 = vmul.f32 %v1189, 0.020408163
        %v1196 = vmul.f32 %v1192, 0.020408163
        %1197 = vmatprep.subr.bf16.mxu0 0
        %1198 = vmatpush1.bf16.msra.mxu0 0
        %1199 = vmatprep.subr.bf16.mxu0 0
        %1200 = vmatpush1.bf16.msra.mxu0 0
        %1201 = vmatprep.subr.bf16.mxu0 0
        %1202 = vmatpush1.bf16.msra.mxu0 0
        %1203 = vmatprep.subr.bf16.mxu0 0
        %1204 = vmatpush1.bf16.msra.mxu0 0
        %1205 = vmatprep.subr.bf16.mxu0 0
        %1206 = vmatpush1.bf16.msra.mxu0 0
        %1207 = vmatprep.subr.bf16.mxu0 0
        %1208 = vmatpush1.bf16.msra.mxu0 0
        %1209 = vmatprep.subr.bf16.mxu0 0
        %1210 = vmatpush1.bf16.msra.mxu0 0
        %1211 = vmatprep.subr.bf16.mxu0 0
        %1212 = vmatpush1.bf16.msra.mxu0 %v686
        %1213 = vmatprep.subr.bf16.mxu0 0
        %1214 = vmatpush2.bf16.msra.mxu0 0
        %1215 = vmatprep.subr.bf16.mxu0 0
        %1216 = vmatpush2.bf16.msra.mxu0 0
        %1217 = vmatprep.subr.bf16.mxu0 0
        %1218 = vmatpush2.bf16.msra.mxu0 0
        %1219 = vmatprep.subr.bf16.mxu0 0
        %1220 = vmatpush2.bf16.msra.mxu0 0
        %1221 = vmatprep.subr.bf16.mxu0 0
        %1222 = vmatpush2.bf16.msra.mxu0 0
        %1223 = vmatprep.subr.bf16.mxu0 0
        %1224 = vmatpush2.bf16.msra.mxu0 0
        %1225 = vmatprep.subr.bf16.mxu0 0
        %1226 = vmatpush2.bf16.msra.mxu0 0
        %1227 = vmatprep.subr.bf16.mxu0 0
        %1228 = vmatpush2.bf16.msra.mxu0 0
        %1229 = vmatprep.mubr.bf16.mxu0 0
        %1230 = vmatmul.mubr.bf16.gmra.mxu0 %v691
        %v1231 = vpop.f32.mrf.mxu0
        %v1232 = vadd.f32 0.0, %v1231
        %v1233 = vpop.f32.mrf.mxu0
        %v1234 = vpop.f32.mrf.mxu0
        %v1235 = vadd.f32 0.0, %v1234
        %v1236 = vpop.f32.mrf.mxu0
        %1237 = vdwg.mxu0
        %1238 = vmatprep.subr.bf16.mxu0 0
        %1239 = vmatpush1.bf16.msra.mxu0 0
        %1240 = vmatprep.subr.bf16.mxu0 0
        %1241 = vmatpush1.bf16.msra.mxu0 0
        %1242 = vmatprep.subr.bf16.mxu0 0
        %1243 = vmatpush1.bf16.msra.mxu0 0
        %1244 = vmatprep.subr.bf16.mxu0 0
        %1245 = vmatpush1.bf16.msra.mxu0 0
        %1246 = vmatprep.subr.bf16.mxu0 0
        %1247 = vmatpush1.bf16.msra.mxu0 0
        %1248 = vmatprep.subr.bf16.mxu0 0
        %1249 = vmatpush1.bf16.msra.mxu0 0
        %1250 = vmatprep.subr.bf16.mxu0 0
        %1251 = vmatpush1.bf16.msra.mxu0 0
        %1252 = vmatprep.subr.bf16.mxu0 0
        %1253 = vmatpush1.bf16.msra.mxu0 %v636
        %1254 = vmatprep.subr.bf16.mxu0 0
        %1255 = vmatpush2.bf16.msra.mxu0 0
        %1256 = vmatprep.subr.bf16.mxu0 0
        %1257 = vmatpush2.bf16.msra.mxu0 0
        %1258 = vmatprep.subr.bf16.mxu0 0
        %1259 = vmatpush2.bf16.msra.mxu0 0
        %1260 = vmatprep.subr.bf16.mxu0 0
        %1261 = vmatpush2.bf16.msra.mxu0 0
        %1262 = vmatprep.subr.bf16.mxu0 0
        %1263 = vmatpush2.bf16.msra.mxu0 0
        %1264 = vmatprep.subr.bf16.mxu0 0
        %1265 = vmatpush2.bf16.msra.mxu0 0
        %1266 = vmatprep.subr.bf16.mxu0 0
        %1267 = vmatpush2.bf16.msra.mxu0 0
        %1268 = vmatprep.subr.bf16.mxu0 0
        %1269 = vmatpush2.bf16.msra.mxu0 0
        %1270 = vmatprep.mubr.bf16.mxu0 0
        %1271 = vmatmul.mubr.bf16.gmra.mxu0 %v691
        %v1272 = vpop.f32.mrf.mxu0
        %v1273 = vadd.f32 %v1232, %v1272
        %v1274 = vpop.f32.mrf.mxu0
        %v1275 = vpop.f32.mrf.mxu0
        %v1276 = vadd.f32 %v1235, %v1275
        %v1277 = vpop.f32.mrf.mxu0
        %1278 = vdwg.mxu0
        %v1279 = vmul.f32 %v1273, 0.020408163
        %v1280 = vmul.f32 %v1276, 0.020408163
        %1281 = vmatprep.subr.bf16.mxu0 0
        %1282 = vmatpush1.bf16.msra.mxu0 0
        %1283 = vmatprep.subr.bf16.mxu0 0
        %1284 = vmatpush1.bf16.msra.mxu0 0
        %1285 = vmatprep.subr.bf16.mxu0 0
        %1286 = vmatpush1.bf16.msra.mxu0 0
        %1287 = vmatprep.subr.bf16.mxu0 0
        %1288 = vmatpush1.bf16.msra.mxu0 0
        %1289 = vmatprep.subr.bf16.mxu0 0
        %1290 = vmatpush1.bf16.msra.mxu0 0
        %1291 = vmatprep.subr.bf16.mxu0 0
        %1292 = vmatpush1.bf16.msra.mxu0 0
        %1293 = vmatprep.subr.bf16.mxu0 0
        %1294 = vmatpush1.bf16.msra.mxu0 0
        %1295 = vmatprep.subr.bf16.mxu0 0
        %1296 = vmatpush1.bf16.msra.mxu0 %v687
        %1297 = vmatprep.subr.bf16.mxu0 0
        %1298 = vmatpush2.bf16.msra.mxu0 0
        %1299 = vmatprep.subr.bf16.mxu0 0
        %1300 = vmatpush2.bf16.msra.mxu0 0
        %1301 = vmatprep.subr.bf16.mxu0 0
        %1302 = vmatpush2.bf16.msra.mxu0 0
        %1303 = vmatprep.subr.bf16.mxu0 0
        %1304 = vmatpush2.bf16.msra.mxu0 0
        %1305 = vmatprep.subr.bf16.mxu0 0
        %1306 = vmatpush2.bf16.msra.mxu0 0
        %1307 = vmatprep.subr.bf16.mxu0 0
        %1308 = vmatpush2.bf16.msra.mxu0 0
        %1309 = vmatprep.subr.bf16.mxu0 0
        %1310 = vmatpush2.bf16.msra.mxu0 0
        %1311 = vmatprep.subr.bf16.mxu0 0
        %1312 = vmatpush2.bf16.msra.mxu0 0
        %1313 = vmatprep.mubr.bf16.mxu0 0
        %1314 = vmatmul.mubr.bf16.gmra.mxu0 %v691
        %v1315 = vpop.f32.mrf.mxu0
        %v1316 = vadd.f32 0.0, %v1315
        %v1317 = vpop.f32.mrf.mxu0
        %v1318 = vpop.f32.mrf.mxu0
        %v1319 = vadd.f32 0.0, %v1318
        %v1320 = vpop.f32.mrf.mxu0
        %1321 = vdwg.mxu0
        %1322 = vmatprep.subr.bf16.mxu0 0
        %1323 = vmatpush1.bf16.msra.mxu0 0
        %1324 = vmatprep.subr.bf16.mxu0 0
        %1325 = vmatpush1.bf16.msra.mxu0 0
        %1326 = vmatprep.subr.bf16.mxu0 0
        %1327 = vmatpush1.bf16.msra.mxu0 0
        %1328 = vmatprep.subr.bf16.mxu0 0
        %1329 = vmatpush1.bf16.msra.mxu0 0
        %1330 = vmatprep.subr.bf16.mxu0 0
        %1331 = vmatpush1.bf16.msra.mxu0 0
        %1332 = vmatprep.subr.bf16.mxu0 0
        %1333 = vmatpush1.bf16.msra.mxu0 0
        %1334 = vmatprep.subr.bf16.mxu0 0
        %1335 = vmatpush1.bf16.msra.mxu0 0
        %1336 = vmatprep.subr.bf16.mxu0 0
        %1337 = vmatpush1.bf16.msra.mxu0 %v637
        %1338 = vmatprep.subr.bf16.mxu0 0
        %1339 = vmatpush2.bf16.msra.mxu0 0
        %1340 = vmatprep.subr.bf16.mxu0 0
        %1341 = vmatpush2.bf16.msra.mxu0 0
        %1342 = vmatprep.subr.bf16.mxu0 0
        %1343 = vmatpush2.bf16.msra.mxu0 0
        %1344 = vmatprep.subr.bf16.mxu0 0
        %1345 = vmatpush2.bf16.msra.mxu0 0
        %1346 = vmatprep.subr.bf16.mxu0 0
        %1347 = vmatpush2.bf16.msra.mxu0 0
        %1348 = vmatprep.subr.bf16.mxu0 0
        %1349 = vmatpush2.bf16.msra.mxu0 0
        %1350 = vmatprep.subr.bf16.mxu0 0
        %1351 = vmatpush2.bf16.msra.mxu0 0
        %1352 = vmatprep.subr.bf16.mxu0 0
        %1353 = vmatpush2.bf16.msra.mxu0 0
        %1354 = vmatprep.mubr.bf16.mxu0 0
        %1355 = vmatmul.mubr.bf16.gmra.mxu0 %v691
        %v1356 = vpop.f32.mrf.mxu0
        %v1357 = vadd.f32 %v1316, %v1356
        %v1358 = vpop.f32.mrf.mxu0
        %v1359 = vpop.f32.mrf.mxu0
        %v1360 = vadd.f32 %v1319, %v1359
        %v1361 = vpop.f32.mrf.mxu0
        %1362 = vdwg.mxu0
        %v1363 = vmul.f32 %v1357, 0.020408163
        %v1364 = vmul.f32 %v1360, 0.020408163
        %1365 = vmatprep.subr.bf16.mxu0 0
        %1366 = vmatpush1.bf16.msra.mxu0 0
        %1367 = vmatprep.subr.bf16.mxu0 0
        %1368 = vmatpush1.bf16.msra.mxu0 0
        %1369 = vmatprep.subr.bf16.mxu0 0
        %1370 = vmatpush1.bf16.msra.mxu0 0
        %1371 = vmatprep.subr.bf16.mxu0 0
        %1372 = vmatpush1.bf16.msra.mxu0 0
        %1373 = vmatprep.subr.bf16.mxu0 0
        %1374 = vmatpush1.bf16.msra.mxu0 0
        %1375 = vmatprep.subr.bf16.mxu0 0
        %1376 = vmatpush1.bf16.msra.mxu0 0
        %1377 = vmatprep.subr.bf16.mxu0 0
        %1378 = vmatpush1.bf16.msra.mxu0 0
        %1379 = vmatprep.subr.bf16.mxu0 0
        %1380 = vmatpush1.bf16.msra.mxu0 %v688
        %1381 = vmatprep.subr.bf16.mxu0 0
        %1382 = vmatpush2.bf16.msra.mxu0 0
        %1383 = vmatprep.subr.bf16.mxu0 0
        %1384 = vmatpush2.bf16.msra.mxu0 0
        %1385 = vmatprep.subr.bf16.mxu0 0
        %1386 = vmatpush2.bf16.msra.mxu0 0
        %1387 = vmatprep.subr.bf16.mxu0 0
        %1388 = vmatpush2.bf16.msra.mxu0 0
        %1389 = vmatprep.subr.bf16.mxu0 0
        %1390 = vmatpush2.bf16.msra.mxu0 0
        %1391 = vmatprep.subr.bf16.mxu0 0
        %1392 = vmatpush2.bf16.msra.mxu0 0
        %1393 = vmatprep.subr.bf16.mxu0 0
        %1394 = vmatpush2.bf16.msra.mxu0 0
        %1395 = vmatprep.subr.bf16.mxu0 0
        %1396 = vmatpush2.bf16.msra.mxu0 0
        %1397 = vmatprep.mubr.bf16.mxu0 0
        %1398 = vmatmul.mubr.bf16.gmra.mxu0 %v691
        %v1399 = vpop.f32.mrf.mxu0
        %v1400 = vadd.f32 0.0, %v1399
        %v1401 = vpop.f32.mrf.mxu0
        %v1402 = vpop.f32.mrf.mxu0
        %v1403 = vadd.f32 0.0, %v1402
        %v1404 = vpop.f32.mrf.mxu0
        %1405 = vdwg.mxu0
        %1406 = vmatprep.subr.bf16.mxu0 0
        %1407 = vmatpush1.bf16.msra.mxu0 0
        %1408 = vmatprep.subr.bf16.mxu0 0
        %1409 = vmatpush1.bf16.msra.mxu0 0
        %1410 = vmatprep.subr.bf16.mxu0 0
        %1411 = vmatpush1.bf16.msra.mxu0 0
        %1412 = vmatprep.subr.bf16.mxu0 0
        %1413 = vmatpush1.bf16.msra.mxu0 0
        %1414 = vmatprep.subr.bf16.mxu0 0
        %1415 = vmatpush1.bf16.msra.mxu0 0
        %1416 = vmatprep.subr.bf16.mxu0 0
        %1417 = vmatpush1.bf16.msra.mxu0 0
        %1418 = vmatprep.subr.bf16.mxu0 0
        %1419 = vmatpush1.bf16.msra.mxu0 0
        %1420 = vmatprep.subr.bf16.mxu0 0
        %1421 = vmatpush1.bf16.msra.mxu0 %v638
        %1422 = vmatprep.subr.bf16.mxu0 0
        %1423 = vmatpush2.bf16.msra.mxu0 0
        %1424 = vmatprep.subr.bf16.mxu0 0
        %1425 = vmatpush2.bf16.msra.mxu0 0
        %1426 = vmatprep.subr.bf16.mxu0 0
        %1427 = vmatpush2.bf16.msra.mxu0 0
        %1428 = vmatprep.subr.bf16.mxu0 0
        %1429 = vmatpush2.bf16.msra.mxu0 0
        %1430 = vmatprep.subr.bf16.mxu0 0
        %1431 = vmatpush2.bf16.msra.mxu0 0
        %1432 = vmatprep.subr.bf16.mxu0 0
        %1433 = vmatpush2.bf16.msra.mxu0 0
        %1434 = vmatprep.subr.bf16.mxu0 0
        %1435 = vmatpush2.bf16.msra.mxu0 0
        %1436 = vmatprep.subr.bf16.mxu0 0
        %1437 = vmatpush2.bf16.msra.mxu0 0
        %1438 = vmatprep.mubr.bf16.mxu0 0
        %1439 = vmatmul.mubr.bf16.gmra.mxu0 %v691
        %v1440 = vpop.f32.mrf.mxu0
        %v1441 = vadd.f32 %v1400, %v1440
        %v1442 = vpop.f32.mrf.mxu0
        %v1443 = vpop.f32.mrf.mxu0
        %v1444 = vadd.f32 %v1403, %v1443
        %v1445 = vpop.f32.mrf.mxu0
        %1446 = vdwg.mxu0
        %v1447 = vmul.f32 %v1441, 0.020408163
        %v1448 = vmul.f32 %v1444, 0.020408163
        %1449 = vmatprep.subr.bf16.mxu0 0
        %1450 = vmatpush1.bf16.msra.mxu0 0
        %1451 = vmatprep.subr.bf16.mxu0 0
        %1452 = vmatpush1.bf16.msra.mxu0 0
        %1453 = vmatprep.subr.bf16.mxu0 0
        %1454 = vmatpush1.bf16.msra.mxu0 0
        %1455 = vmatprep.subr.bf16.mxu0 0
        %1456 = vmatpush1.bf16.msra.mxu0 0
        %1457 = vmatprep.subr.bf16.mxu0 0
        %1458 = vmatpush1.bf16.msra.mxu0 0
        %1459 = vmatprep.subr.bf16.mxu0 0
        %1460 = vmatpush1.bf16.msra.mxu0 0
        %1461 = vmatprep.subr.bf16.mxu0 0
        %1462 = vmatpush1.bf16.msra.mxu0 0
        %1463 = vmatprep.subr.bf16.mxu0 0
        %1464 = vmatpush1.bf16.msra.mxu0 %v689
        %1465 = vmatprep.subr.bf16.mxu0 0
        %1466 = vmatpush2.bf16.msra.mxu0 0
        %1467 = vmatprep.subr.bf16.mxu0 0
        %1468 = vmatpush2.bf16.msra.mxu0 0
        %1469 = vmatprep.subr.bf16.mxu0 0
        %1470 = vmatpush2.bf16.msra.mxu0 0
        %1471 = vmatprep.subr.bf16.mxu0 0
        %1472 = vmatpush2.bf16.msra.mxu0 0
        %1473 = vmatprep.subr.bf16.mxu0 0
        %1474 = vmatpush2.bf16.msra.mxu0 0
        %1475 = vmatprep.subr.bf16.mxu0 0
        %1476 = vmatpush2.bf16.msra.mxu0 0
        %1477 = vmatprep.subr.bf16.mxu0 0
        %1478 = vmatpush2.bf16.msra.mxu0 0
        %1479 = vmatprep.subr.bf16.mxu0 0
        %1480 = vmatpush2.bf16.msra.mxu0 0
        %1481 = vmatprep.mubr.bf16.mxu0 0
        %1482 = vmatmul.mubr.bf16.gmra.mxu0 %v691
        %v1483 = vpop.f32.mrf.mxu0
        %v1484 = vadd.f32 0.0, %v1483
        %v1485 = vpop.f32.mrf.mxu0
        %v1486 = vpop.f32.mrf.mxu0
        %v1487 = vadd.f32 0.0, %v1486
        %v1488 = vpop.f32.mrf.mxu0
        %1489 = vdwg.mxu0
        %1490 = vmatprep.subr.bf16.mxu0 0
        %1491 = vmatpush1.bf16.msra.mxu0 0
        %1492 = vmatprep.subr.bf16.mxu0 0
        %1493 = vmatpush1.bf16.msra.mxu0 0
        %1494 = vmatprep.subr.bf16.mxu0 0
        %1495 = vmatpush1.bf16.msra.mxu0 0
        %1496 = vmatprep.subr.bf16.mxu0 0
        %1497 = vmatpush1.bf16.msra.mxu0 0
        %1498 = vmatprep.subr.bf16.mxu0 0
        %1499 = vmatpush1.bf16.msra.mxu0 0
        %1500 = vmatprep.subr.bf16.mxu0 0
        %1501 = vmatpush1.bf16.msra.mxu0 0
        %1502 = vmatprep.subr.bf16.mxu0 0
        %1503 = vmatpush1.bf16.msra.mxu0 0
        %1504 = vmatprep.subr.bf16.mxu0 0
        %1505 = vmatpush1.bf16.msra.mxu0 %v639
        %1506 = vmatprep.subr.bf16.mxu0 0
        %1507 = vmatpush2.bf16.msra.mxu0 0
        %1508 = vmatprep.subr.bf16.mxu0 0
        %1509 = vmatpush2.bf16.msra.mxu0 0
        %1510 = vmatprep.subr.bf16.mxu0 0
        %1511 = vmatpush2.bf16.msra.mxu0 0
        %1512 = vmatprep.subr.bf16.mxu0 0
        %1513 = vmatpush2.bf16.msra.mxu0 0
        %1514 = vmatprep.subr.bf16.mxu0 0
        %1515 = vmatpush2.bf16.msra.mxu0 0
        %1516 = vmatprep.subr.bf16.mxu0 0
        %1517 = vmatpush2.bf16.msra.mxu0 0
        %1518 = vmatprep.subr.bf16.mxu0 0
        %1519 = vmatpush2.bf16.msra.mxu0 0
        %1520 = vmatprep.subr.bf16.mxu0 0
        %1521 = vmatpush2.bf16.msra.mxu0 0
        %1522 = vmatprep.mubr.bf16.mxu0 0
        %1523 = vmatmul.mubr.bf16.gmra.mxu0 %v691
        %v1524 = vpop.f32.mrf.mxu0
        %v1525 = vadd.f32 %v1484, %v1524
        %v1526 = vpop.f32.mrf.mxu0
        %v1527 = vpop.f32.mrf.mxu0
        %v1528 = vadd.f32 %v1487, %v1527
        %v1529 = vpop.f32.mrf.mxu0
        %1530 = vdwg.mxu0
        %v1531 = vmul.f32 %v1525, 0.020408163
        %v1532 = vmul.f32 %v1528, 0.020408163
        %v1533 = vsel %vm343, %v267, -inf
        %v1534 = vsel %vm343, %v268, -inf
        %v1535 = vmax.f32 %v1533, %v1534
        %1536 = vmax.xlane.f32.xlu0 %v1535
        %v1537 = vpop.xlane.xlu0 %1536
        %v1538 = vrot.slane %v1537, 4
        %v1539 = vmax.f32 %v1537, %v1538
        %v1540 = vrot.slane %v1539, 2
        %v1541 = vmax.f32 %v1539, %v1540
        %v1542 = vrot.slane %v1541, 1
        %v1543 = vmax.f32 %v1541, %v1542
        %s1544 = vtos %v1543
        %v1545 = vsel %vm343, %v267, inf
        %v1546 = vsel %vm343, %v268, inf
        %v1547 = vmin.f32 %v1545, %v1546
        %1548 = vmin.xlane.f32.xlu0 %v1547
        %v1549 = vpop.xlane.xlu0 %1548
        %v1550 = vrot.slane %v1549, 4
        %v1551 = vmin.f32 %v1549, %v1550
        %v1552 = vrot.slane %v1551, 2
        %v1553 = vmin.f32 %v1551, %v1552
        %v1554 = vrot.slane %v1553, 1
        %v1555 = vmin.f32 %v1553, %v1554
        %s1556 = vtos %v1555
        %s1557 = ssub.f32 %s1544, %s1556
        %v1558 = vsel %vm343, %v263, -inf
        %v1559 = vsel %vm343, %v264, -inf
        %v1560 = vmax.f32 %v1558, %v1559
        %1561 = vmax.xlane.f32.xlu0 %v1560
        %v1562 = vpop.xlane.xlu0 %1561
        %v1563 = vrot.slane %v1562, 4
        %v1564 = vmax.f32 %v1562, %v1563
        %v1565 = vrot.slane %v1564, 2
        %v1566 = vmax.f32 %v1564, %v1565
        %v1567 = vrot.slane %v1566, 1
        %v1568 = vmax.f32 %v1566, %v1567
        %s1569 = vtos %v1568
        %v1570 = vsel %vm343, %v263, inf
        %v1571 = vsel %vm343, %v264, inf
        %v1572 = vmin.f32 %v1570, %v1571
        %1573 = vmin.xlane.f32.xlu0 %v1572
        %v1574 = vpop.xlane.xlu0 %1573
        %v1575 = vrot.slane %v1574, 4
        %v1576 = vmin.f32 %v1574, %v1575
        %v1577 = vrot.slane %v1576, 2
        %v1578 = vmin.f32 %v1576, %v1577
        %v1579 = vrot.slane %v1578, 1
        %v1580 = vmin.f32 %v1578, %v1579
        %s1581 = vtos %v1580
        %s1582 = ssub.f32 %s1569, %s1581
        %s1583 = smax.f32 %s1557, %s1582
        %s1584 = smul.f32 %s1583, 0.01
        %s1585 = smul.f32 %s1584, %s1584
        %s1586 = smul.f32 %s1583, 0.03
        %s1587 = smul.f32 %s1586, %s1586
        %v1588 = vmul.f32 %v775, %v775
        %v1589 = vmul.f32 %v776, %v776
        %v1590 = vsub.f32 %v1111, %v1588
        %v1591 = vsub.f32 %v1112, %v1589
        %v1592 = vmul.f32 %v1590, 1.0208334
        %v1593 = vmul.f32 %v1591, 1.0208334
        %v1594 = vmul.f32 %v943, %v943
        %v1595 = vmul.f32 %v944, %v944
        %v1596 = vsub.f32 %v1279, %v1594
        %v1597 = vsub.f32 %v1280, %v1595
        %v1598 = vmul.f32 %v1596, 1.0208334
        %v1599 = vmul.f32 %v1597, 1.0208334
        %v1600 = vmul.f32 %v775, %v943
        %v1601 = vmul.f32 %v776, %v944
        %v1602 = vsub.f32 %v1447, %v1600
        %v1603 = vsub.f32 %v1448, %v1601
        %v1604 = vmul.f32 %v1602, 1.0208334
        %v1605 = vmul.f32 %v1603, 1.0208334
        %v1606 = vmul.f32 %v775, 2.0
        %v1607 = vmul.f32 %v776, 2.0
        %v1608 = vmul.f32 %v1606, %v943
        %v1609 = vmul.f32 %v1607, %v944
        %v1610 = vstv %s1585
        %v1611 = vadd.f32 %v1608, %v1610
        %v1612 = vadd.f32 %v1609, %v1610
        %v1613 = vmul.f32 %v1604, 2.0
        %v1614 = vmul.f32 %v1605, 2.0
        %v1615 = vstv %s1587
        %v1616 = vadd.f32 %v1613, %v1615
        %v1617 = vadd.f32 %v1614, %v1615
        %v1618 = vadd.f32 %v1588, %v1594
        %v1619 = vadd.f32 %v1589, %v1595
        %v1620 = vadd.f32 %v1618, %v1610
        %v1621 = vadd.f32 %v1619, %v1610
        %v1622 = vadd.f32 %v1592, %v1598
        %v1623 = vadd.f32 %v1593, %v1599
        %v1624 = vadd.f32 %v1622, %v1615
        %v1625 = vadd.f32 %v1623, %v1615
        %v1626 = vmul.f32 %v1611, %v1616
        %v1627 = vmul.f32 %v1612, %v1617
        %v1628 = vmul.f32 %v1620, %v1624
        %v1629 = vmul.f32 %v1621, %v1625
        %v1630 = vrcp.pop %v1628
        %v1631 = vrcp.pop %v1629
        %v1632 = vmul.f32 %v1626, %v1630
        %v1633 = vmul.f32 %v1627, %v1631
        %vm1634 = vcmask 80896
        %v1635 = vsel %vm1634, %v1632, 0.0
        %vm1636 = vcmask 74752
        %v1637 = vsel %vm1636, %v1633, 0.0
        %v1638 = vadd.f32 %v1635, %v1637
        %v1639 = vrot.slane %v1638, 4
        %v1640 = vadd.f32 %v1638, %v1639
        %v1641 = vrot.slane %v1640, 2
        %v1642 = vadd.f32 %v1640, %v1641
        %v1643 = vrot.slane %v1642, 1
        %v1644 = vadd.f32 %v1642, %v1643
        %v1645 = vadd.f32 %v1644, 0.0
        %v1646 = vsel %vm343, %v269, -inf
        %v1647 = vsel %vm343, %v270, -inf
        %v1648 = vmax.f32 %v1646, %v1647
        %1649 = vmax.xlane.f32.xlu0 %v1648
        %v1650 = vpop.xlane.xlu0 %1649
        %v1651 = vrot.slane %v1650, 4
        %v1652 = vmax.f32 %v1650, %v1651
        %v1653 = vrot.slane %v1652, 2
        %v1654 = vmax.f32 %v1652, %v1653
        %v1655 = vrot.slane %v1654, 1
        %v1656 = vmax.f32 %v1654, %v1655
        %s1657 = vtos %v1656
        %v1658 = vsel %vm343, %v269, inf
        %v1659 = vsel %vm343, %v270, inf
        %v1660 = vmin.f32 %v1658, %v1659
        %1661 = vmin.xlane.f32.xlu0 %v1660
        %v1662 = vpop.xlane.xlu0 %1661
        %v1663 = vrot.slane %v1662, 4
        %v1664 = vmin.f32 %v1662, %v1663
        %v1665 = vrot.slane %v1664, 2
        %v1666 = vmin.f32 %v1664, %v1665
        %v1667 = vrot.slane %v1666, 1
        %v1668 = vmin.f32 %v1666, %v1667
        %s1669 = vtos %v1668
        %s1670 = ssub.f32 %s1657, %s1669
        %v1671 = vsel %vm343, %v265, -inf
        %v1672 = vsel %vm343, %v266, -inf
        %v1673 = vmax.f32 %v1671, %v1672
        %1674 = vmax.xlane.f32.xlu0 %v1673
        %v1675 = vpop.xlane.xlu0 %1674
        %v1676 = vrot.slane %v1675, 4
        %v1677 = vmax.f32 %v1675, %v1676
        %v1678 = vrot.slane %v1677, 2
        %v1679 = vmax.f32 %v1677, %v1678
        %v1680 = vrot.slane %v1679, 1
        %v1681 = vmax.f32 %v1679, %v1680
        %s1682 = vtos %v1681
        %v1683 = vsel %vm343, %v265, inf
        %v1684 = vsel %vm343, %v266, inf
        %v1685 = vmin.f32 %v1683, %v1684
        %1686 = vmin.xlane.f32.xlu0 %v1685
        %v1687 = vpop.xlane.xlu0 %1686
        %v1688 = vrot.slane %v1687, 4
        %v1689 = vmin.f32 %v1687, %v1688
        %v1690 = vrot.slane %v1689, 2
        %v1691 = vmin.f32 %v1689, %v1690
        %v1692 = vrot.slane %v1691, 1
        %v1693 = vmin.f32 %v1691, %v1692
        %s1694 = vtos %v1693
        %s1695 = ssub.f32 %s1682, %s1694
        %s1696 = smax.f32 %s1670, %s1695
        %s1697 = smul.f32 %s1696, 0.01
        %s1698 = smul.f32 %s1697, %s1697
        %s1699 = smul.f32 %s1696, 0.03
        %s1700 = smul.f32 %s1699, %s1699
        %v1701 = vmul.f32 %v859, %v859
        %v1702 = vmul.f32 %v860, %v860
        %v1703 = vsub.f32 %v1195, %v1701
        %v1704 = vsub.f32 %v1196, %v1702
        %v1705 = vmul.f32 %v1703, 1.0208334
        %v1706 = vmul.f32 %v1704, 1.0208334
        %v1707 = vmul.f32 %v1027, %v1027
        %v1708 = vmul.f32 %v1028, %v1028
        %v1709 = vsub.f32 %v1363, %v1707
        %v1710 = vsub.f32 %v1364, %v1708
        %v1711 = vmul.f32 %v1709, 1.0208334
        %v1712 = vmul.f32 %v1710, 1.0208334
        %v1713 = vmul.f32 %v859, %v1027
        %v1714 = vmul.f32 %v860, %v1028
        %v1715 = vsub.f32 %v1531, %v1713
        %v1716 = vsub.f32 %v1532, %v1714
        %v1717 = vmul.f32 %v1715, 1.0208334
        %v1718 = vmul.f32 %v1716, 1.0208334
        %v1719 = vmul.f32 %v859, 2.0
        %v1720 = vmul.f32 %v860, 2.0
        %v1721 = vmul.f32 %v1719, %v1027
        %v1722 = vmul.f32 %v1720, %v1028
        %v1723 = vstv %s1698
        %v1724 = vadd.f32 %v1721, %v1723
        %v1725 = vadd.f32 %v1722, %v1723
        %v1726 = vmul.f32 %v1717, 2.0
        %v1727 = vmul.f32 %v1718, 2.0
        %v1728 = vstv %s1700
        %v1729 = vadd.f32 %v1726, %v1728
        %v1730 = vadd.f32 %v1727, %v1728
        %v1731 = vadd.f32 %v1701, %v1707
        %v1732 = vadd.f32 %v1702, %v1708
        %v1733 = vadd.f32 %v1731, %v1723
        %v1734 = vadd.f32 %v1732, %v1723
        %v1735 = vadd.f32 %v1705, %v1711
        %v1736 = vadd.f32 %v1706, %v1712
        %v1737 = vadd.f32 %v1735, %v1728
        %v1738 = vadd.f32 %v1736, %v1728
        %v1739 = vmul.f32 %v1724, %v1729
        %v1740 = vmul.f32 %v1725, %v1730
        %v1741 = vmul.f32 %v1733, %v1737
        %v1742 = vmul.f32 %v1734, %v1738
        %v1743 = vrcp.pop %v1741
        %v1744 = vrcp.pop %v1742
        %v1745 = vmul.f32 %v1739, %v1743
        %v1746 = vmul.f32 %v1740, %v1744
        %v1747 = vsel %vm1634, %v1745, 0.0
        %v1748 = vsel %vm1636, %v1746, 0.0
        %v1749 = vadd.f32 %v1747, %v1748
        %v1750 = vrot.slane %v1749, 4
        %v1751 = vadd.f32 %v1749, %v1750
        %v1752 = vrot.slane %v1751, 2
        %v1753 = vadd.f32 %v1751, %v1752
        %v1754 = vrot.slane %v1753, 1
        %v1755 = vadd.f32 %v1753, %v1754
        %v1756 = vadd.f32 %v1645, %v1755
        %vm1757 = vcmask 73728
        %v1758 = vsel %vm1757, %v1756, 0.0
        %1759 = vadd.xlane.f32.xlu0 %v1758
        %v1760 = vpop.xlane.xlu0 %1759
        %v1761 = vrot.slane %v1760, 4
        %v1762 = vadd.f32 %v1760, %v1761
        %v1763 = vrot.slane %v1762, 2
        %v1764 = vadd.f32 %v1762, %v1763
        %v1765 = vrot.slane %v1764, 1
        %v1766 = vadd.f32 %v1764, %v1765
        %s1767 = vtos %v1766
        %v1768 = vstv %s1767
        %1769 = vst [vmem:[%s235] sm:$0xff] %v1768
        %p1770 = scmp.lt.s32.totalorder %s23, 1
        %s1771 = scalar_select %p1770, %s23, 1
        %p1772 = scmp.lt.s32.totalorder %s24, 1
        %s1773 = scalar_select %p1772, %s24, 1
        %s1774 = smul.addr %s1771, 2
        %s1775 = sadd.s32 %s1773, %s1774
        %s1776 = smul.addr %s1775, 8
        %s1777 = scalar_lea.vmem %s2, %s1776
        // Predicated region
        $region37: #{ssim_loss_pallas.1} parent=27 // pred_check
          %p1778 = pneg %p107
        $region38: #{ssim_loss_pallas.1} parent=27 // pred_check_branch
          %1780 = sbr.rel (%p1778) target = $region40
        $region39: #{ssim_loss_pallas.1} parent=27 // pred_region
          _
        $region40: #{ssim_loss_pallas.1} parent=27 // pred_fallthru
          _
      $region28: #{ssim_loss_pallas.1} parent=5 // pred_fallthru
        _
      %p1781 = scmp.le.s32.totalorder 2, %s14
      // Predicated region
      $region41: #{ssim_loss_pallas.1} parent=5 // pred_check
        %p1782 = pneg %p1781
      $region42: #{ssim_loss_pallas.1} parent=5 // pred_check_branch
        %1784 = sbr.rel (%p1782) target = $region44
      $region43: #{ssim_loss_pallas.1} parent=5 // pred_region
        %s1785 = ssub.s32 %s14, 2
        // Predicated region
        $region45: #{ssim_loss_pallas.1} parent=43 // pred_check
          %p1786 = pneg %p113
        $region46: #{ssim_loss_pallas.1} parent=43 // pred_check_branch
          %1788 = sbr.rel (%p1786) target = $region48
        $region47: #{ssim_loss_pallas.1} parent=43 // pred_region
          %p1789 = scmp.lt.s32.totalorder %s25, 1
          %s1790 = scalar_select %p1789, %s25, 1
          %p1791 = scmp.lt.s32.totalorder %s26, 1
          %s1792 = scalar_select %p1791, %s26, 1
          %s1793 = smul.addr %s1790, 2
          %s1794 = sadd.s32 %s1792, %s1793
          %s1795 = smul.addr %s1794, 8
          %s1796 = scalar_lea.vmem %s2, %s1795
        $region48: #{ssim_loss_pallas.1} parent=43 // pred_fallthru
          _
      $region44: #{ssim_loss_pallas.1} parent=5 // pred_fallthru
        _
    $region6: #{ssim_loss_pallas.1} parent=1 // loop_footer
      %s18 = sadd.s32 1, %s14
    $region7: #{ssim_loss_pallas.1} parent=1 // loop_footer_branch
      %13 = sbr.rel target = $region3
    $region8: #{ssim_loss_pallas.1} parent=1 // loop_exit
      _
    %1797 = vsyncpa [#allocation3], 1
    %s1798 = scalar_lea.sflag [#allocation3], 1
    %1799 = vsyncpa %s1798, 1
    %1800 = vsyncpa [#allocation5], 1
    %s1801 = scalar_lea.sflag [#allocation5], 1
    %1802 = vsyncpa %s1801, 1

</llo_original>
